<compile_context>
chip_gen: v6e
topology: v6e:2x2x1
jax: 0.10.0
libtpu: 0.0.40
codegen_flags: <defaults>
</compile_context>

<pallas_src>
import math

import jax
import jax.numpy as jnp
from jax.experimental import pallas as pl
from jax.experimental.pallas import tpu as pltpu

# ----------------------------- config --------------------------------------
SOCIAL_DIM = 50          # GNNComponent default social_dim


def _vmem_limit_bytes():
    """Scoped-VMEM budget: <= 3/4 of this generation's physical VMEM, capped at 96 MiB."""
    cap = 64 << 20  # assume the tightest generation (v7x) if the query is unavailable
    try:
        cap = int(getattr(pltpu.get_tpu_info(), "vmem_capacity_bytes", cap))
    except Exception:
        pass
    return int(min(3 * cap // 4, 96 << 20))


_VMEM_LIMIT = _vmem_limit_bytes()


def _pick_row_tile(n, target=128):
    """Largest multiple-of-8 divisor of n that is <= target; else a single whole tile."""
    if n % 8 != 0:
        return n
    best = n if n <= target else 0
    t = min(target, n)
    while t >= 8 and best == 0:
        if n % t == 0 and t % 8 == 0:
            best = t
        t -= 8
    return best if best > 0 else n


# ------------------------- Pallas kernels ----------------------------------
def _gru_step_kernel(x_ref, h_ref, wih_ref, whh_ref, bih_ref, bhh_ref, o_ref):
    """One GRU cell step (PyTorch gate order r, z, n):  h' = (1-z)*n + z*h."""
    x = x_ref[...]
    h = h_ref[...]

    def gates(k):
        gi = jnp.dot(x, wih_ref[k], preferred_element_type=jnp.float32) + bih_ref[k]
        gh = jnp.dot(h, whh_ref[k], preferred_element_type=jnp.float32) + bhh_ref[k]
        return gi, gh

    i_r, h_r = gates(0)
    i_z, h_z = gates(1)
    i_n, h_n = gates(2)
    r = jax.nn.sigmoid(i_r + h_r)
    z = jax.nn.sigmoid(i_z + h_z)
    n = jnp.tanh(i_n + r * h_n)
    o_ref[...] = ((1.0 - z) * n + z * h).astype(o_ref.dtype)


def gru_step(x, h, w_ih, w_hh, b_ih, b_hh):
    """h_new = GRUCell(x, h).  x, h: [B, C]; w_*: [3, C, C] (pre-transposed); b_*: [3, 1, C]."""
    B, C = x.shape
    return pl.pallas_call(
        _gru_step_kernel,
        out_shape=jax.ShapeDtypeStruct((B, C), jnp.float32),
        grid=(1,),
        in_specs=[
            pl.BlockSpec((B, C), lambda i: (0, 0)),
            pl.BlockSpec((B, C), lambda i: (0, 0)),
            pl.BlockSpec((3, C, C), lambda i: (0, 0, 0)),
            pl.BlockSpec((3, C, C), lambda i: (0, 0, 0)),
            pl.BlockSpec((3, 1, C), lambda i: (0, 0, 0)),
            pl.BlockSpec((3, 1, C), lambda i: (0, 0, 0)),
        ],
        out_specs=pl.BlockSpec((B, C), lambda i: (0, 0)),
        compiler_params=pltpu.CompilerParams(
            dimension_semantics=("arbitrary",),
            vmem_limit_bytes=_VMEM_LIMIT,
        ),
    )(x, h, w_ih, w_hh, b_ih, b_hh)


def _gcn_tanh_kernel(a_ref, x_ref, w_ref, o_ref, xw_ref):
    """out_tile = tanh(A[row_tile, :] @ (X @ W)).

    X @ W is computed once (first grid step) into the persistent VMEM scratch and
    reused by every subsequent row tile — no HBM round trip for the intermediate.
    """
    @pl.when(pl.program_id(0) == 0)
    def _():
        xw_ref[...] = jnp.dot(x_ref[...], w_ref[...],
                              preferred_element_type=jnp.float32)

    o_ref[...] = jnp.tanh(
        jnp.dot(a_ref[...], xw_ref[...], preferred_element_type=jnp.float32)
    ).astype(o_ref.dtype)


def gcn_conv_fixed_w_tanh(a_norm, x, w, block_rows=None):
    """tanh(GCNConv_Fixed_W(W, X)) with a dense, pre-normalized adjacency.

    a_norm: [N, N] symmetric-normalized adjacency (self-loops included)
    x     : [N, D] node features
    w     : [D, D] GRU-evolved weight
    """
    N, D = x.shape
    tm = block_rows if block_rows is not None else _pick_row_tile(N)
    if N % tm != 0:
        tm = N                                      # fall back to a single row tile
    return pl.pallas_call(
        _gcn_tanh_kernel,
        out_shape=jax.ShapeDtypeStruct((N, D), jnp.float32),
        grid=(N // tm,),
        in_specs=[
            pl.BlockSpec((tm, N), lambda i: (i, 0)),   # A row tile
            pl.BlockSpec((N, D), lambda i: (0, 0)),    # X (constant block index -> fetched once)
            pl.BlockSpec((D, D), lambda i: (0, 0)),    # W (fetched once)
        ],
        out_specs=pl.BlockSpec((tm, D), lambda i: (i, 0)),
        scratch_shapes=[pltpu.VMEM((N, D), jnp.float32)],
        compiler_params=pltpu.CompilerParams(
            # "arbitrary": the X@W scratch written on step 0 is reused by later steps,
            # so this axis must stay on one TensorCore.
            dimension_semantics=("arbitrary",),
            vmem_limit_bytes=_VMEM_LIMIT,
        ),
    )(a_norm, x, w)


# --------------------------- graph glue (JAX) -------------------------------
def build_normalized_adjacency(edge_index, num_nodes, edge_weight=None,
                               improved=False, add_self_loops=True):
    """Dense PyG gcn_norm:  A_norm[i, j] = deg^-1/2[i] * w(j->i) * deg^-1/2[j]."""
    src = edge_index[0]
    dst = edge_index[1]
    if edge_weight is None:
        edge_weight = jnp.ones(src.shape, jnp.float32)
    a = jnp.zeros((num_nodes, num_nodes), jnp.float32)
    a = a.at[dst, src].add(edge_weight)                      # A[i, j] = weight of edge j -> i
    if add_self_loops:
        # add_remaining_self_loops: only nodes WITHOUT a self-loop get fill_value on the diagonal
        fill = 2.0 if improved else 1.0
        idx = jnp.arange(num_nodes)
        diag = a[idx, idx]
        a = a.at[idx, idx].set(jnp.where(diag != 0.0, diag, fill))
    deg = jnp.sum(a, axis=1)
    dis = jnp.where(deg > 0.0, jax.lax.rsqrt(deg), 0.0)
    return a * dis[:, None] * dis[None, :]


# --------------------------- parameters ------------------------------------
def _glorot(key, shape):
    fan_in, fan_out = shape[-2], shape[-1]
    limit = math.sqrt(6.0 / (fan_in + fan_out))
    return jax.random.uniform(key, shape, jnp.float32, -limit, limit)


def init_roland_params(key, c):
    ks = jax.random.split(key, 5)
    bound = 1.0 / math.sqrt(c)      # PyTorch GRU default init
    u = lambda k, shp: jax.random.uniform(k, shp, jnp.float32, -bound, bound)
    return {
        "initial_weight": _glorot(ks[0], (c, c)),
        "w_ih": u(ks[1], (3, c, c)),     # gate order r, z, n; stored input-major (pre-transposed)
        "w_hh": u(ks[2], (3, c, c)),
        "b_ih": u(ks[3], (3, 1, c)),
        "b_hh": u(ks[4], (3, 1, c)),
    }


def init_gnn_component_params(key, social_dim=SOCIAL_DIM):
    k1, k2 = jax.random.split(key)
    return {"conv_1": init_roland_params(k1, social_dim),
            "conv_2": init_roland_params(k2, social_dim)}


# ----------------------------- forward --------------------------------------
def roland_layer_tanh(lp, x, a_norm):
    """tanh(Roland(x, edge_index)); dropout p=0.2 is identity in eval mode."""
    w0 = lp["initial_weight"]
    # GRU(W0[None], W0[None]) with seq_len == 1  ==  one GRUCell step with x = h = W0.
    w_evolved = gru_step(w0, w0, lp["w_ih"], lp["w_hh"], lp["b_ih"], lp["b_hh"])
    return gcn_conv_fixed_w_tanh(a_norm, x, w_evolved)


def gnn_component_forward(params, users, x, edge_index):
    """GNNComponent(gnn='roland').forward(users, graph_data) in eval mode."""
    n = x.shape[0]
    a_norm = build_normalized_adjacency(edge_index, n)       # gcn_norm glue
    h = roland_layer_tanh(params["conv_1"], x, a_norm)
    out = roland_layer_tanh(params["conv_2"], h, a_norm)
    return out[users]                                        # gather is glue


# ------------------------------- main ----------------------------------------
if __name__ == "__main__":
    key = jax.random.PRNGKey(0)
    pkey, xkey, ekey = jax.random.split(key, 3)

    num_nodes = 256          # small, but large enough to exercise the row-tiled grid (2 tiles)
    num_edges = 512
    params = init_gnn_component_params(pkey, SOCIAL_DIM)

    x = jax.random.normal(xkey, (num_nodes, SOCIAL_DIM), jnp.float32)
    e1, e2 = jax.random.split(ekey)
    src = jax.random.randint(e1, (num_edges,), 0, num_nodes, dtype=jnp.int32)
    dst = jax.random.randint(e2, (num_edges,), 0, num_nodes, dtype=jnp.int32)
    # undirected graph: include both directions, like a typical PyG edge_index
    edge_index = jnp.stack([jnp.concatenate([src, dst]),
                            jnp.concatenate([dst, src])]).astype(jnp.int32)
    users = jnp.array([0, 3, 7, 12], jnp.int32)

    fwd = jax.jit(gnn_component_forward)
    out = fwd(params, users, x, edge_index)
    out = jax.block_until_ready(out)
    assert out.shape == (users.shape[0], SOCIAL_DIM)
    assert bool(jnp.all(jnp.isfinite(out)))
    print("KERNEL_OK")
</pallas_src>

<mosaic_0001>
module attributes {stable_mosaic.version = 11 : i64} {
  func.func private @main(%arg0: i32) attributes {dimension_semantics = [#tpu.dimension_semantics<core_parallel>], iteration_bounds = array<i64: 2>, tpu.core_type = #tpu.core_type<sc_scalar_subcore>, window_params = []} {
    return
  }
}

module attributes {stable_mosaic.version = 11 : i64} {
  func.func private @main(%arg0: i32) attributes {dimension_semantics = [#tpu.dimension_semantics<core_parallel>], iteration_bounds = array<i64: 2>, tpu.core_type = #tpu.core_type<sc_scalar_subcore>, window_params = []} {
    return
  }
}

module attributes {stable_mosaic.version = 11 : i64} {
  func.func @_gru_step_kernel(%arg0: i32, %arg1: memref<50x50xf32, #tpu.memory_space<vmem>>, %arg2: memref<50x50xf32, #tpu.memory_space<vmem>>, %arg3: memref<3x50x50xf32, #tpu.memory_space<vmem>>, %arg4: memref<3x50x50xf32, #tpu.memory_space<vmem>>, %arg5: memref<3x1x50xf32, #tpu.memory_space<vmem>>, %arg6: memref<3x1x50xf32, #tpu.memory_space<vmem>>, %arg7: memref<50x50xf32, #tpu.memory_space<vmem>>) attributes {dimension_semantics = [#tpu.dimension_semantics<arbitrary>], iteration_bounds = array<i64: 1>, scalar_prefetch = 0 : i64, scratch_operands = 0 : i64, tpu.core_type = #tpu.core_type<tc>, window_params = [{pipeline_mode = #tpu.pipeline_mode<synchronous>, transform_indices = @transform_0, window_bounds = array<i64: 50, 50>}, {pipeline_mode = #tpu.pipeline_mode<synchronous>, transform_indices = @transform_1, window_bounds = array<i64: 50, 50>}, {pipeline_mode = #tpu.pipeline_mode<synchronous>, transform_indices = @transform_2, window_bounds = array<i64: 3, 50, 50>}, {pipeline_mode = #tpu.pipeline_mode<synchronous>, transform_indices = @transform_3, window_bounds = array<i64: 3, 50, 50>}, {pipeline_mode = #tpu.pipeline_mode<synchronous>, transform_indices = @transform_4, window_bounds = array<i64: 3, 1, 50>}, {pipeline_mode = #tpu.pipeline_mode<synchronous>, transform_indices = @transform_5, window_bounds = array<i64: 3, 1, 50>}, {pipeline_mode = #tpu.pipeline_mode<synchronous>, transform_indices = @transform_6, window_bounds = array<i64: 50, 50>}]} {
    %c0 = arith.constant 0 : index
    %c0_0 = arith.constant 0 : index
    %0 = vector.load %arg1[%c0, %c0_0] : memref<50x50xf32, #tpu.memory_space<vmem>>, vector<50x50xf32>
    %c0_1 = arith.constant 0 : index
    %c0_2 = arith.constant 0 : index
    %1 = vector.load %arg2[%c0_1, %c0_2] : memref<50x50xf32, #tpu.memory_space<vmem>>, vector<50x50xf32>
    %c0_3 = arith.constant 0 : index
    %c0_4 = arith.constant 0 : index
    %c0_5 = arith.constant 0 : index
    %2 = vector.load %arg3[%c0_3, %c0_4, %c0_5] : memref<3x50x50xf32, #tpu.memory_space<vmem>>, vector<1x50x50xf32>
    %3 = vector.shape_cast %2 : vector<1x50x50xf32> to vector<50x50xf32>
    %cst = arith.constant dense<0.000000e+00> : vector<50x50xf32>
    %4 = tpu.matmul %0, %3, %cst {dimension_numbers = #tpu.dot_dimension_numbers<[1], [0], [0], [1], [0, 0, 1, 1], [], []>} : vector<50x50xf32>, vector<50x50xf32>, vector<50x50xf32> -> vector<50x50xf32>
    %c0_6 = arith.constant 0 : index
    %c0_7 = arith.constant 0 : index
    %c0_8 = arith.constant 0 : index
    %5 = vector.load %arg5[%c0_6, %c0_7, %c0_8] : memref<3x1x50xf32, #tpu.memory_space<vmem>>, vector<1x1x50xf32>
    %6 = vector.shape_cast %5 : vector<1x1x50xf32> to vector<1x50xf32>
    %7 = vector.broadcast %6 : vector<1x50xf32> to vector<50x50xf32>
    %8 = arith.addf %4, %7 : vector<50x50xf32>
    %c0_9 = arith.constant 0 : index
    %c0_10 = arith.constant 0 : index
    %c0_11 = arith.constant 0 : index
    %9 = vector.load %arg4[%c0_9, %c0_10, %c0_11] : memref<3x50x50xf32, #tpu.memory_space<vmem>>, vector<1x50x50xf32>
    %10 = vector.shape_cast %9 : vector<1x50x50xf32> to vector<50x50xf32>
    %cst_12 = arith.constant dense<0.000000e+00> : vector<50x50xf32>
    %11 = tpu.matmul %1, %10, %cst_12 {dimension_numbers = #tpu.dot_dimension_numbers<[1], [0], [0], [1], [0, 0, 1, 1], [], []>} : vector<50x50xf32>, vector<50x50xf32>, vector<50x50xf32> -> vector<50x50xf32>
    %c0_13 = arith.constant 0 : index
    %c0_14 = arith.constant 0 : index
    %c0_15 = arith.constant 0 : index
    %12 = vector.load %arg6[%c0_13, %c0_14, %c0_15] : memref<3x1x50xf32, #tpu.memory_space<vmem>>, vector<1x1x50xf32>
    %13 = vector.shape_cast %12 : vector<1x1x50xf32> to vector<1x50xf32>
    %14 = vector.broadcast %13 : vector<1x50xf32> to vector<50x50xf32>
    %15 = arith.addf %11, %14 : vector<50x50xf32>
    %c1 = arith.constant 1 : index
    %c0_16 = arith.constant 0 : index
    %c0_17 = arith.constant 0 : index
    %16 = vector.load %arg3[%c1, %c0_16, %c0_17] : memref<3x50x50xf32, #tpu.memory_space<vmem>>, vector<1x50x50xf32>
    %17 = vector.shape_cast %16 : vector<1x50x50xf32> to vector<50x50xf32>
    %cst_18 = arith.constant dense<0.000000e+00> : vector<50x50xf32>
    %18 = tpu.matmul %0, %17, %cst_18 {dimension_numbers = #tpu.dot_dimension_numbers<[1], [0], [0], [1], [0, 0, 1, 1], [], []>} : vector<50x50xf32>, vector<50x50xf32>, vector<50x50xf32> -> vector<50x50xf32>
    %c1_19 = arith.constant 1 : index
    %c0_20 = arith.constant 0 : index
    %c0_21 = arith.constant 0 : index
    %19 = vector.load %arg5[%c1_19, %c0_20, %c0_21] : memref<3x1x50xf32, #tpu.memory_space<vmem>>, vector<1x1x50xf32>
    %20 = vector.shape_cast %19 : vector<1x1x50xf32> to vector<1x50xf32>
    %21 = vector.broadcast %20 : vector<1x50xf32> to vector<50x50xf32>
    %22 = arith.addf %18, %21 : vector<50x50xf32>
    %c1_22 = arith.constant 1 : index
    %c0_23 = arith.constant 0 : index
    %c0_24 = arith.constant 0 : index
    %23 = vector.load %arg4[%c1_22, %c0_23, %c0_24] : memref<3x50x50xf32, #tpu.memory_space<vmem>>, vector<1x50x50xf32>
    %24 = vector.shape_cast %23 : vector<1x50x50xf32> to vector<50x50xf32>
    %cst_25 = arith.constant dense<0.000000e+00> : vector<50x50xf32>
    %25 = tpu.matmul %1, %24, %cst_25 {dimension_numbers = #tpu.dot_dimension_numbers<[1], [0], [0], [1], [0, 0, 1, 1], [], []>} : vector<50x50xf32>, vector<50x50xf32>, vector<50x50xf32> -> vector<50x50xf32>
    %c1_26 = arith.constant 1 : index
    %c0_27 = arith.constant 0 : index
    %c0_28 = arith.constant 0 : index
    %26 = vector.load %arg6[%c1_26, %c0_27, %c0_28] : memref<3x1x50xf32, #tpu.memory_space<vmem>>, vector<1x1x50xf32>
    %27 = vector.shape_cast %26 : vector<1x1x50xf32> to vector<1x50xf32>
    %28 = vector.broadcast %27 : vector<1x50xf32> to vector<50x50xf32>
    %29 = arith.addf %25, %28 : vector<50x50xf32>
    %c2 = arith.constant 2 : index
    %c0_29 = arith.constant 0 : index
    %c0_30 = arith.constant 0 : index
    %30 = vector.load %arg3[%c2, %c0_29, %c0_30] : memref<3x50x50xf32, #tpu.memory_space<vmem>>, vector<1x50x50xf32>
    %31 = vector.shape_cast %30 : vector<1x50x50xf32> to vector<50x50xf32>
    %cst_31 = arith.constant dense<0.000000e+00> : vector<50x50xf32>
    %32 = tpu.matmul %0, %31, %cst_31 {dimension_numbers = #tpu.dot_dimension_numbers<[1], [0], [0], [1], [0, 0, 1, 1], [], []>} : vector<50x50xf32>, vector<50x50xf32>, vector<50x50xf32> -> vector<50x50xf32>
    %c2_32 = arith.constant 2 : index
    %c0_33 = arith.constant 0 : index
    %c0_34 = arith.constant 0 : index
    %33 = vector.load %arg5[%c2_32, %c0_33, %c0_34] : memref<3x1x50xf32, #tpu.memory_space<vmem>>, vector<1x1x50xf32>
    %34 = vector.shape_cast %33 : vector<1x1x50xf32> to vector<1x50xf32>
    %35 = vector.broadcast %34 : vector<1x50xf32> to vector<50x50xf32>
    %36 = arith.addf %32, %35 : vector<50x50xf32>
    %c2_35 = arith.constant 2 : index
    %c0_36 = arith.constant 0 : index
    %c0_37 = arith.constant 0 : index
    %37 = vector.load %arg4[%c2_35, %c0_36, %c0_37] : memref<3x50x50xf32, #tpu.memory_space<vmem>>, vector<1x50x50xf32>
    %38 = vector.shape_cast %37 : vector<1x50x50xf32> to vector<50x50xf32>
    %cst_38 = arith.constant dense<0.000000e+00> : vector<50x50xf32>
    %39 = tpu.matmul %1, %38, %cst_38 {dimension_numbers = #tpu.dot_dimension_numbers<[1], [0], [0], [1], [0, 0, 1, 1], [], []>} : vector<50x50xf32>, vector<50x50xf32>, vector<50x50xf32> -> vector<50x50xf32>
    %c2_39 = arith.constant 2 : index
    %c0_40 = arith.constant 0 : index
    %c0_41 = arith.constant 0 : index
    %40 = vector.load %arg6[%c2_39, %c0_40, %c0_41] : memref<3x1x50xf32, #tpu.memory_space<vmem>>, vector<1x1x50xf32>
    %41 = vector.shape_cast %40 : vector<1x1x50xf32> to vector<1x50xf32>
    %42 = vector.broadcast %41 : vector<1x50xf32> to vector<50x50xf32>
    %43 = arith.addf %39, %42 : vector<50x50xf32>
    %44 = arith.addf %8, %15 : vector<50x50xf32>
    %45 = arith.negf %44 : vector<50x50xf32>
    %46 = math.exp %45 : vector<50x50xf32>
    %cst_42 = arith.constant 1.000000e+00 : f32
    %47 = vector.broadcast %cst_42 : f32 to vector<50x50xf32>
    %48 = arith.addf %47, %46 : vector<50x50xf32>
    %49 = arith.divf %47, %48 : vector<50x50xf32>
    %50 = arith.addf %22, %29 : vector<50x50xf32>
    %51 = arith.negf %50 : vector<50x50xf32>
    %52 = math.exp %51 : vector<50x50xf32>
    %cst_43 = arith.constant 1.000000e+00 : f32
    %53 = vector.broadcast %cst_43 : f32 to vector<50x50xf32>
    %54 = arith.addf %53, %52 : vector<50x50xf32>
    %55 = arith.divf %53, %54 : vector<50x50xf32>
    %56 = arith.mulf %49, %43 : vector<50x50xf32>
    %57 = arith.addf %36, %56 : vector<50x50xf32>
    %58 = math.tanh %57 : vector<50x50xf32>
    %cst_44 = arith.constant 1.000000e+00 : f32
    %59 = vector.broadcast %cst_44 : f32 to vector<50x50xf32>
    %60 = arith.subf %59, %55 : vector<50x50xf32>
    %61 = arith.mulf %60, %58 : vector<50x50xf32>
    %62 = arith.mulf %55, %1 : vector<50x50xf32>
    %63 = arith.addf %61, %62 : vector<50x50xf32>
    %c0_45 = arith.constant 0 : index
    %c0_46 = arith.constant 0 : index
    %64 = vector.load %arg7[%c0_45, %c0_46] : memref<50x50xf32, #tpu.memory_space<vmem>>, vector<50x50xf32>
    tpu.vector_store %arg7[%c0_45, %c0_46], %63 {strides = array<i32>} : memref<50x50xf32, #tpu.memory_space<vmem>>, vector<50x50xf32>,
    return
  }
  func.func @transform_0(%arg0: i32) -> (i32, i32) {
    %c0_i32 = arith.constant 0 : i32
    %c0_i32_0 = arith.constant 0 : i32
    %c0_i32_1 = arith.constant 0 : i32
    return %c0_i32, %c0_i32_0 : i32, i32
  }
  func.func @transform_1(%arg0: i32) -> (i32, i32) {
    %c0_i32 = arith.constant 0 : i32
    %c0_i32_0 = arith.constant 0 : i32
    %c0_i32_1 = arith.constant 0 : i32
    return %c0_i32, %c0_i32_0 : i32, i32
  }
  func.func @transform_2(%arg0: i32) -> (i32, i32, i32) {
    %c0_i32 = arith.constant 0 : i32
    %c0_i32_0 = arith.constant 0 : i32
    %c0_i32_1 = arith.constant 0 : i32
    %c0_i32_2 = arith.constant 0 : i32
    return %c0_i32, %c0_i32_0, %c0_i32_1 : i32, i32, i32
  }
  func.func @transform_3(%arg0: i32) -> (i32, i32, i32) {
    %c0_i32 = arith.constant 0 : i32
    %c0_i32_0 = arith.constant 0 : i32
    %c0_i32_1 = arith.constant 0 : i32
    %c0_i32_2 = arith.constant 0 : i32
    return %c0_i32, %c0_i32_0, %c0_i32_1 : i32, i32, i32
  }
  func.func @transform_4(%arg0: i32) -> (i32, i32, i32) {
    %c0_i32 = arith.constant 0 : i32
    %c0_i32_0 = arith.constant 0 : i32
    %c0_i32_1 = arith.constant 0 : i32
    %c0_i32_2 = arith.constant 0 : i32
    return %c0_i32, %c0_i32_0, %c0_i32_1 : i32, i32, i32
  }
  func.func @transform_5(%arg0: i32) -> (i32, i32, i32) {
    %c0_i32 = arith.constant 0 : i32
    %c0_i32_0 = arith.constant 0 : i32
    %c0_i32_1 = arith.constant 0 : i32
    %c0_i32_2 = arith.constant 0 : i32
    return %c0_i32, %c0_i32_0, %c0_i32_1 : i32, i32, i32
  }
  func.func @transform_6(%arg0: i32) -> (i32, i32) {
    %c0_i32 = arith.constant 0 : i32
    %c0_i32_0 = arith.constant 0 : i32
    %c0_i32_1 = arith.constant 0 : i32
    return %c0_i32, %c0_i32_0 : i32, i32
  }
}

module attributes {stable_mosaic.version = 11 : i64} {
  func.func @_gcn_tanh_kernel(%arg0: i32, %arg1: memref<128x256xf32, #tpu.memory_space<vmem>>, %arg2: memref<256x50xf32, #tpu.memory_space<vmem>>, %arg3: memref<50x50xf32, #tpu.memory_space<vmem>>, %arg4: memref<128x50xf32, #tpu.memory_space<vmem>>, %arg5: memref<256x50xf32, #tpu.memory_space<vmem>>) attributes {dimension_semantics = [#tpu.dimension_semantics<arbitrary>], iteration_bounds = array<i64: 2>, scalar_prefetch = 0 : i64, scratch_operands = 1 : i64, tpu.core_type = #tpu.core_type<tc>, window_params = [{transform_indices = @transform_0, window_bounds = array<i64: 128, 256>}, {pipeline_mode = #tpu.pipeline_mode<synchronous>, transform_indices = @transform_1, window_bounds = array<i64: 256, 50>}, {pipeline_mode = #tpu.pipeline_mode<synchronous>, transform_indices = @transform_2, window_bounds = array<i64: 50, 50>}, {transform_indices = @transform_3, window_bounds = array<i64: 128, 50>}]} {
    %c0_i32 = arith.constant 0 : i32
    %0 = arith.cmpi eq, %arg0, %c0_i32 : i32
    %1 = arith.extui %0 : i1 to i32
    %c0_i32_0 = arith.constant 0 : i32
    %2 = arith.cmpi ne, %1, %c0_i32_0 : i32
    scf.if %2 {
      %c0_6 = arith.constant 0 : index
      %c0_7 = arith.constant 0 : index
      %8 = vector.load %arg2[%c0_6, %c0_7] : memref<256x50xf32, #tpu.memory_space<vmem>>, vector<256x50xf32>
      %c0_8 = arith.constant 0 : index
      %c0_9 = arith.constant 0 : index
      %9 = vector.load %arg3[%c0_8, %c0_9] : memref<50x50xf32, #tpu.memory_space<vmem>>, vector<50x50xf32>
      %cst_10 = arith.constant dense<0.000000e+00> : vector<256x50xf32>
      %10 = tpu.matmul %8, %9, %cst_10 {dimension_numbers = #tpu.dot_dimension_numbers<[1], [0], [0], [1], [0, 0, 1, 1], [], []>} : vector<256x50xf32>, vector<50x50xf32>, vector<256x50xf32> -> vector<256x50xf32>
      %c0_11 = arith.constant 0 : index
      %c0_12 = arith.constant 0 : index
      %11 = vector.load %arg5[%c0_11, %c0_12] : memref<256x50xf32, #tpu.memory_space<vmem>>, vector<256x50xf32>
      tpu.vector_store %arg5[%c0_11, %c0_12], %10 {strides = array<i32>} : memref<256x50xf32, #tpu.memory_space<vmem>>, vector<256x50xf32>,
    } else {
    }
    %c0 = arith.constant 0 : index
    %c0_1 = arith.constant 0 : index
    %3 = vector.load %arg1[%c0, %c0_1] : memref<128x256xf32, #tpu.memory_space<vmem>>, vector<128x256xf32>
    %c0_2 = arith.constant 0 : index
    %c0_3 = arith.constant 0 : index
    %4 = vector.load %arg5[%c0_2, %c0_3] : memref<256x50xf32, #tpu.memory_space<vmem>>, vector<256x50xf32>
    %cst = arith.constant dense<0.000000e+00> : vector<128x50xf32>
    %5 = tpu.matmul %3, %4, %cst {dimension_numbers = #tpu.dot_dimension_numbers<[1], [0], [0], [1], [0, 0, 1, 1], [], []>} : vector<128x256xf32>, vector<256x50xf32>, vector<128x50xf32> -> vector<128x50xf32>
    %6 = math.tanh %5 : vector<128x50xf32>
    %c0_4 = arith.constant 0 : index
    %c0_5 = arith.constant 0 : index
    %7 = vector.load %arg4[%c0_4, %c0_5] : memref<128x50xf32, #tpu.memory_space<vmem>>, vector<128x50xf32>
    tpu.vector_store %arg4[%c0_4, %c0_5], %6 {strides = array<i32>} : memref<128x50xf32, #tpu.memory_space<vmem>>, vector<128x50xf32>,
    return
  }
  func.func @transform_0(%arg0: i32) -> (i32, i32) {
    %c0_i32 = arith.constant 0 : i32
    %c0_i32_0 = arith.constant 0 : i32
    return %arg0, %c0_i32 : i32, i32
  }
  func.func @transform_1(%arg0: i32) -> (i32, i32) {
    %c0_i32 = arith.constant 0 : i32
    %c0_i32_0 = arith.constant 0 : i32
    %c0_i32_1 = arith.constant 0 : i32
    return %c0_i32, %c0_i32_0 : i32, i32
  }
  func.func @transform_2(%arg0: i32) -> (i32, i32) {
    %c0_i32 = arith.constant 0 : i32
    %c0_i32_0 = arith.constant 0 : i32
    %c0_i32_1 = arith.constant 0 : i32
    return %c0_i32, %c0_i32_0 : i32, i32
  }
  func.func @transform_3(%arg0: i32) -> (i32, i32) {
    %c0_i32 = arith.constant 0 : i32
    %c0_i32_0 = arith.constant 0 : i32
    return %arg0, %c0_i32 : i32, i32
  }
}

</mosaic_0001>

<llo_original>
// kernel: gnn_component_forward.4
$region0: #{gnn_component_forward.4}
  #allocation0 [shape = 'u32[]', space=smem, size = 0x4, offset = 0x4, fixed_abs, tag = 'smem constant byte address 0x4 - core index']
  #allocation1 [shape = 'u32[144,128]{1,0:T(1,128)}', space=vmem, size = 0x12000, scoped, tag = 'internal scratch']
  %s0 = inlined_call_operand.vmem [shape: f32[50,50], index: 0, kind: input, shape index: {}, may-alias: {0,1}]
  %s1 = inlined_call_operand.vmem [shape: f32[50,50], index: 1, kind: input, shape index: {}, may-alias: {0,1}]
  %s2 = inlined_call_operand.vmem [shape: f32[3,50,50], index: 2, kind: input, shape index: {}]
  %s3 = inlined_call_operand.vmem [shape: f32[3,50,50], index: 3, kind: input, shape index: {}]
  %s4 = inlined_call_operand.vmem [shape: f32[3,1,50], index: 4, kind: input, shape index: {}]
  %s5 = inlined_call_operand.vmem [shape: f32[3,1,50], index: 5, kind: input, shape index: {}]
  %s6 = inlined_call_operand.vmem [shape: f32[50,50], index: 6, kind: output, shape index: {}]
  %s7 = sld [smem:[#allocation0]]
  $region34: #{gnn_component_forward.4} parent=0
    _
  %s9 = ssub.s32 1, %s7
  %s10 = scalar_select 0, %s9, %s7
  // Predicated region
  $region2: #{gnn_component_forward.4} parent=0 // pred_check
    _
  $region3: #{gnn_component_forward.4} parent=0 // pred_check_branch
    %12 = sbr.rel (0) target = $region5
  $region4: #{gnn_component_forward.4} parent=0 // pred_region
    _
  $region5: #{gnn_component_forward.4} parent=0 // pred_fallthru
    _
  // Predicated region
  $region6: #{gnn_component_forward.4} parent=0 // pred_check
    _
  $region7: #{gnn_component_forward.4} parent=0 // pred_check_branch
    %14 = sbr.rel (0) target = $region9
  $region8: #{gnn_component_forward.4} parent=0 // pred_region
    _
  $region9: #{gnn_component_forward.4} parent=0 // pred_fallthru
    _
  // Predicated region
  $region10: #{gnn_component_forward.4} parent=0 // pred_check
    _
  $region11: #{gnn_component_forward.4} parent=0 // pred_check_branch
    %16 = sbr.rel (0) target = $region13
  $region12: #{gnn_component_forward.4} parent=0 // pred_region
    _
  $region13: #{gnn_component_forward.4} parent=0 // pred_fallthru
    _
  // Predicated region
  $region14: #{gnn_component_forward.4} parent=0 // pred_check
    _
  $region15: #{gnn_component_forward.4} parent=0 // pred_check_branch
    %18 = sbr.rel (0) target = $region17
  $region16: #{gnn_component_forward.4} parent=0 // pred_region
    _
  $region17: #{gnn_component_forward.4} parent=0 // pred_fallthru
    _
  // Predicated region
  $region18: #{gnn_component_forward.4} parent=0 // pred_check
    _
  $region19: #{gnn_component_forward.4} parent=0 // pred_check_branch
    %20 = sbr.rel (0) target = $region21
  $region20: #{gnn_component_forward.4} parent=0 // pred_region
    _
  $region21: #{gnn_component_forward.4} parent=0 // pred_fallthru
    _
  // Predicated region
  $region22: #{gnn_component_forward.4} parent=0 // pred_check
    _
  $region23: #{gnn_component_forward.4} parent=0 // pred_check_branch
    %22 = sbr.rel (0) target = $region25
  $region24: #{gnn_component_forward.4} parent=0 // pred_region
    _
  $region25: #{gnn_component_forward.4} parent=0 // pred_fallthru
    _
  %v23 = vld [vmem:[%s0] sm:$0xff]
  %v24 = vld [vmem:[%s0 + $0x8] sm:$0xff]
  %v25 = vld [vmem:[%s0 + $0x10] sm:$0xff]
  %v26 = vld [vmem:[%s0 + $0x18] sm:$0xff]
  %v27 = vld [vmem:[%s0 + $0x20] sm:$0xff]
  %v28 = vld [vmem:[%s0 + $0x28] sm:$0xff]
  %v29 = vld [vmem:[%s0 + $0x30] sm:$0x3]
  %v30 = vld [vmem:[%s1] sm:$0xff]
  %v31 = vld [vmem:[%s1 + $0x8] sm:$0xff]
  %v32 = vld [vmem:[%s1 + $0x10] sm:$0xff]
  %v33 = vld [vmem:[%s1 + $0x18] sm:$0xff]
  %v34 = vld [vmem:[%s1 + $0x20] sm:$0xff]
  %v35 = vld [vmem:[%s1 + $0x28] sm:$0xff]
  %v36 = vld [vmem:[%s1 + $0x30] sm:$0x3]
  %v37 = vld [vmem:[%s2] sm:$0xff]
  %v38 = vld [vmem:[%s2 + $0x8] sm:$0xff]
  %v39 = vld [vmem:[%s2 + $0x10] sm:$0xff]
  %v40 = vld [vmem:[%s2 + $0x18] sm:$0xff]
  %v41 = vld [vmem:[%s2 + $0x20] sm:$0xff]
  %v42 = vld [vmem:[%s2 + $0x28] sm:$0xff]
  %v43 = vld [vmem:[%s2 + $0x30] sm:$0x3]
  %v44 = vld [vmem:[%s4] sm:$0x1]
  %v46 = vlaneseq
  %v47 = vshrl.u32 %v46, 7
  %v48 = vsub.s32 0, %v47
  %v49 = vrot.slane %v44, %v48
  %vm51 = vcmask 408576
  %v53 = vsel %vm51, %v23, 0
  %v56 = vsel %vm51, %v24, 0
  %v59 = vsel %vm51, %v25, 0
  %v62 = vsel %vm51, %v26, 0
  %v65 = vsel %vm51, %v27, 0
  %v68 = vsel %vm51, %v28, 0
  %v71 = vsel %vm51, %v29, 0
  %vm73 = vcmask 1041408
  %v75 = vsel %vm73, %v43, 0
  %77 = vmatprep.subr.mxu0 0.0
  %78 = vmatpush1.msra.mxu0 0.0
  %79 = vmatprep.subr.mxu0 0.0
  %80 = vmatpush1.msra.mxu0 0.0
  %81 = vmatprep.subr.mxu0 0.0
  %82 = vmatpush1.msra.mxu0 0.0
  %83 = vmatprep.subr.mxu0 0.0
  %84 = vmatpush1.msra.mxu0 0.0
  %85 = vmatprep.subr.mxu0 0.0
  %86 = vmatpush1.msra.mxu0 0.0
  %87 = vmatprep.subr.mxu0 0.0
  %88 = vmatpush1.msra.mxu0 0.0
  %89 = vmatprep.subr.mxu0 0.0
  %90 = vmatpush1.msra.mxu0 0.0
  %91 = vmatprep.subr.mxu0 0.0
  %92 = vmatpush1.msra.mxu0 0.0
  %93 = vmatprep.subr.mxu0 0.0
  %94 = vmatpush1.msra.mxu0 0.0
  %95 = vmatprep.subr.mxu0 0.0
  %96 = vmatpush1.msra.mxu0 %v75
  %97 = vmatprep.subr.mxu0 0.0
  %98 = vmatpush1.msra.mxu0 %v42
  %99 = vmatprep.subr.mxu0 0.0
  %100 = vmatpush1.msra.mxu0 %v41
  %101 = vmatprep.subr.mxu0 0.0
  %102 = vmatpush1.msra.mxu0 %v40
  %103 = vmatprep.subr.mxu0 0.0
  %104 = vmatpush1.msra.mxu0 %v39
  %105 = vmatprep.subr.mxu0 0.0
  %106 = vmatpush1.msra.mxu0 %v38
  %107 = vmatprep.subr.mxu0 0.0
  %108 = vmatpush1.msra.mxu0 %v37
  %109 = vmatprep.subr.mxu0 0.0
  %110 = vmatpush2.msra.mxu0 0.0
  %111 = vmatprep.subr.mxu0 0.0
  %112 = vmatpush2.msra.mxu0 0.0
  %113 = vmatprep.subr.mxu0 0.0
  %114 = vmatpush2.msra.mxu0 0.0
  %115 = vmatprep.subr.mxu0 0.0
  %116 = vmatpush2.msra.mxu0 0.0
  %117 = vmatprep.subr.mxu0 0.0
  %118 = vmatpush2.msra.mxu0 0.0
  %119 = vmatprep.subr.mxu0 0.0
  %120 = vmatpush2.msra.mxu0 0.0
  %121 = vmatprep.subr.mxu0 0.0
  %122 = vmatpush2.msra.mxu0 0.0
  %123 = vmatprep.subr.mxu0 0.0
  %124 = vmatpush2.msra.mxu0 0.0
  %125 = vmatprep.subr.mxu0 0.0
  %126 = vmatpush2.msra.mxu0 0.0
  %127 = vmatprep.subr.mxu0 0.0
  %128 = vmatpush2.msra.mxu0 0.0
  %129 = vmatprep.subr.mxu0 0.0
  %130 = vmatpush2.msra.mxu0 0.0
  %131 = vmatprep.subr.mxu0 0.0
  %132 = vmatpush2.msra.mxu0 0.0
  %133 = vmatprep.subr.mxu0 0.0
  %134 = vmatpush2.msra.mxu0 0.0
  %135 = vmatprep.subr.mxu0 0.0
  %136 = vmatpush2.msra.mxu0 0.0
  %137 = vmatprep.subr.mxu0 0.0
  %138 = vmatpush2.msra.mxu0 0.0
  %139 = vmatprep.subr.mxu0 0.0
  %140 = vmatpush2.msra.mxu0 0.0
  %141 = vmatprep.mubr.f32.mxu0 0.0
  %142 = vmatmul.mubr.f32.gmra.mxu0 %v53
  %v143 = vpop.f32.mrf.mxu0
  %v144 = vadd.f32 %v49, %v143
  %v145 = vpop.f32.mrf.mxu0
  %146 = vmatprep.mubr.f32.mxu0 0.0
  %147 = vmatmul.mubr.f32.gmra.mxu0 %v56
  %v148 = vpop.f32.mrf.mxu0
  %v149 = vadd.f32 %v49, %v148
  %v150 = vpop.f32.mrf.mxu0
  %151 = vmatprep.mubr.f32.mxu0 0.0
  %152 = vmatmul.mubr.f32.gmra.mxu0 %v59
  %v153 = vpop.f32.mrf.mxu0
  %v154 = vadd.f32 %v49, %v153
  %v155 = vpop.f32.mrf.mxu0
  %156 = vmatprep.mubr.f32.mxu0 0.0
  %157 = vmatmul.mubr.f32.gmra.mxu0 %v62
  %v158 = vpop.f32.mrf.mxu0
  %v159 = vadd.f32 %v49, %v158
  %v160 = vpop.f32.mrf.mxu0
  %161 = vmatprep.mubr.f32.mxu0 0.0
  %162 = vmatmul.mubr.f32.gmra.mxu0 %v65
  %v163 = vpop.f32.mrf.mxu0
  %v164 = vadd.f32 %v49, %v163
  %v165 = vpop.f32.mrf.mxu0
  %166 = vmatprep.mubr.f32.mxu0 0.0
  %167 = vmatmul.mubr.f32.gmra.mxu0 %v68
  %v168 = vpop.f32.mrf.mxu0
  %v169 = vadd.f32 %v49, %v168
  %v170 = vpop.f32.mrf.mxu0
  %171 = vmatprep.mubr.f32.mxu0 0.0
  %172 = vmatmul.mubr.f32.gmra.mxu0 %v71
  %v173 = vpop.f32.mrf.mxu0
  %v174 = vadd.f32 %v49, %v173
  %v175 = vpop.f32.mrf.mxu0
  %176 = vdwg.mxu0
  %v177 = vld [vmem:[%s3] sm:$0xff]
  %v178 = vld [vmem:[%s3 + $0x8] sm:$0xff]
  %v179 = vld [vmem:[%s3 + $0x10] sm:$0xff]
  %v180 = vld [vmem:[%s3 + $0x18] sm:$0xff]
  %v181 = vld [vmem:[%s3 + $0x20] sm:$0xff]
  %v182 = vld [vmem:[%s3 + $0x28] sm:$0xff]
  %v183 = vld [vmem:[%s3 + $0x30] sm:$0x3]
  %v184 = vld [vmem:[%s5] sm:$0x1]
  %v186 = vlaneseq
  %v187 = vshrl.u32 %v186, 7
  %v188 = vsub.s32 0, %v187
  %v189 = vrot.slane %v184, %v188
  %v192 = vsel %vm51, %v30, 0
  %v195 = vsel %vm51, %v31, 0
  %v198 = vsel %vm51, %v32, 0
  %v201 = vsel %vm51, %v33, 0
  %v204 = vsel %vm51, %v34, 0
  %v207 = vsel %vm51, %v35, 0
  %v210 = vsel %vm51, %v36, 0
  %v213 = vsel %vm73, %v183, 0
  %215 = vmatprep.subr.mxu0 0.0
  %216 = vmatpush1.msra.mxu0 0.0
  %217 = vmatprep.subr.mxu0 0.0
  %218 = vmatpush1.msra.mxu0 0.0
  %219 = vmatprep.subr.mxu0 0.0
  %220 = vmatpush1.msra.mxu0 0.0
  %221 = vmatprep.subr.mxu0 0.0
  %222 = vmatpush1.msra.mxu0 0.0
  %223 = vmatprep.subr.mxu0 0.0
  %224 = vmatpush1.msra.mxu0 0.0
  %225 = vmatprep.subr.mxu0 0.0
  %226 = vmatpush1.msra.mxu0 0.0
  %227 = vmatprep.subr.mxu0 0.0
  %228 = vmatpush1.msra.mxu0 0.0
  %229 = vmatprep.subr.mxu0 0.0
  %230 = vmatpush1.msra.mxu0 0.0
  %231 = vmatprep.subr.mxu0 0.0
  %232 = vmatpush1.msra.mxu0 0.0
  %233 = vmatprep.subr.mxu0 0.0
  %234 = vmatpush1.msra.mxu0 %v213
  %235 = vmatprep.subr.mxu0 0.0
  %236 = vmatpush1.msra.mxu0 %v182
  %237 = vmatprep.subr.mxu0 0.0
  %238 = vmatpush1.msra.mxu0 %v181
  %239 = vmatprep.subr.mxu0 0.0
  %240 = vmatpush1.msra.mxu0 %v180
  %241 = vmatprep.subr.mxu0 0.0
  %242 = vmatpush1.msra.mxu0 %v179
  %243 = vmatprep.subr.mxu0 0.0
  %244 = vmatpush1.msra.mxu0 %v178
  %245 = vmatprep.subr.mxu0 0.0
  %246 = vmatpush1.msra.mxu0 %v177
  %247 = vmatprep.subr.mxu0 0.0
  %248 = vmatpush2.msra.mxu0 0.0
  %249 = vmatprep.subr.mxu0 0.0
  %250 = vmatpush2.msra.mxu0 0.0
  %251 = vmatprep.subr.mxu0 0.0
  %252 = vmatpush2.msra.mxu0 0.0
  %253 = vmatprep.subr.mxu0 0.0
  %254 = vmatpush2.msra.mxu0 0.0
  %255 = vmatprep.subr.mxu0 0.0
  %256 = vmatpush2.msra.mxu0 0.0
  %257 = vmatprep.subr.mxu0 0.0
  %258 = vmatpush2.msra.mxu0 0.0
  %259 = vmatprep.subr.mxu0 0.0
  %260 = vmatpush2.msra.mxu0 0.0
  %261 = vmatprep.subr.mxu0 0.0
  %262 = vmatpush2.msra.mxu0 0.0
  %263 = vmatprep.subr.mxu0 0.0
  %264 = vmatpush2.msra.mxu0 0.0
  %265 = vmatprep.subr.mxu0 0.0
  %266 = vmatpush2.msra.mxu0 0.0
  %267 = vmatprep.subr.mxu0 0.0
  %268 = vmatpush2.msra.mxu0 0.0
  %269 = vmatprep.subr.mxu0 0.0
  %270 = vmatpush2.msra.mxu0 0.0
  %271 = vmatprep.subr.mxu0 0.0
  %272 = vmatpush2.msra.mxu0 0.0
  %273 = vmatprep.subr.mxu0 0.0
  %274 = vmatpush2.msra.mxu0 0.0
  %275 = vmatprep.subr.mxu0 0.0
  %276 = vmatpush2.msra.mxu0 0.0
  %277 = vmatprep.subr.mxu0 0.0
  %278 = vmatpush2.msra.mxu0 0.0
  %279 = vmatprep.mubr.f32.mxu0 0.0
  %280 = vmatmul.mubr.f32.gmra.mxu0 %v192
  %v281 = vpop.f32.mrf.mxu0
  %v282 = vadd.f32 %v189, %v281
  %v283 = vpop.f32.mrf.mxu0
  %284 = vmatprep.mubr.f32.mxu0 0.0
  %285 = vmatmul.mubr.f32.gmra.mxu0 %v195
  %v286 = vpop.f32.mrf.mxu0
  %v287 = vadd.f32 %v189, %v286
  %v288 = vpop.f32.mrf.mxu0
  %289 = vmatprep.mubr.f32.mxu0 0.0
  %290 = vmatmul.mubr.f32.gmra.mxu0 %v198
  %v291 = vpop.f32.mrf.mxu0
  %v292 = vadd.f32 %v189, %v291
  %v293 = vpop.f32.mrf.mxu0
  %294 = vmatprep.mubr.f32.mxu0 0.0
  %295 = vmatmul.mubr.f32.gmra.mxu0 %v201
  %v296 = vpop.f32.mrf.mxu0
  %v297 = vadd.f32 %v189, %v296
  %v298 = vpop.f32.mrf.mxu0
  %299 = vmatprep.mubr.f32.mxu0 0.0
  %300 = vmatmul.mubr.f32.gmra.mxu0 %v204
  %v301 = vpop.f32.mrf.mxu0
  %v302 = vadd.f32 %v189, %v301
  %v303 = vpop.f32.mrf.mxu0
  %304 = vmatprep.mubr.f32.mxu0 0.0
  %305 = vmatmul.mubr.f32.gmra.mxu0 %v207
  %v306 = vpop.f32.mrf.mxu0
  %v307 = vadd.f32 %v189, %v306
  %v308 = vpop.f32.mrf.mxu0
  %309 = vmatprep.mubr.f32.mxu0 0.0
  %310 = vmatmul.mubr.f32.gmra.mxu0 %v210
  %v311 = vpop.f32.mrf.mxu0
  %v312 = vadd.f32 %v189, %v311
  %v313 = vpop.f32.mrf.mxu0
  %314 = vdwg.mxu0
  %s315 = scalar_lea.vmem %s2, 56
  %v316 = vld [vmem:[%s315] sm:$0xff]
  %v317 = vld [vmem:[%s315 + $0x8] sm:$0xff]
  %v318 = vld [vmem:[%s315 + $0x10] sm:$0xff]
  %v319 = vld [vmem:[%s315 + $0x18] sm:$0xff]
  %v320 = vld [vmem:[%s315 + $0x20] sm:$0xff]
  %v321 = vld [vmem:[%s315 + $0x28] sm:$0xff]
  %v322 = vld [vmem:[%s315 + $0x30] sm:$0x3]
  %s323 = scalar_lea.vmem %s4, 1
  %v324 = vld [vmem:[%s323] sm:$0x1]
  %v326 = vlaneseq
  %v327 = vshrl.u32 %v326, 7
  %v328 = vsub.s32 0, %v327
  %v329 = vrot.slane %v324, %v328
  %v332 = vsel %vm73, %v322, 0
  %334 = vmatprep.subr.mxu0 0.0
  %335 = vmatpush1.msra.mxu0 0.0
  %336 = vmatprep.subr.mxu0 0.0
  %337 = vmatpush1.msra.mxu0 0.0
  %338 = vmatprep.subr.mxu0 0.0
  %339 = vmatpush1.msra.mxu0 0.0
  %340 = vmatprep.subr.mxu0 0.0
  %341 = vmatpush1.msra.mxu0 0.0
  %342 = vmatprep.subr.mxu0 0.0
  %343 = vmatpush1.msra.mxu0 0.0
  %344 = vmatprep.subr.mxu0 0.0
  %345 = vmatpush1.msra.mxu0 0.0
  %346 = vmatprep.subr.mxu0 0.0
  %347 = vmatpush1.msra.mxu0 0.0
  %348 = vmatprep.subr.mxu0 0.0
  %349 = vmatpush1.msra.mxu0 0.0
  %350 = vmatprep.subr.mxu0 0.0
  %351 = vmatpush1.msra.mxu0 0.0
  %352 = vmatprep.subr.mxu0 0.0
  %353 = vmatpush1.msra.mxu0 %v332
  %354 = vmatprep.subr.mxu0 0.0
  %355 = vmatpush1.msra.mxu0 %v321
  %356 = vmatprep.subr.mxu0 0.0
  %357 = vmatpush1.msra.mxu0 %v320
  %358 = vmatprep.subr.mxu0 0.0
  %359 = vmatpush1.msra.mxu0 %v319
  %360 = vmatprep.subr.mxu0 0.0
  %361 = vmatpush1.msra.mxu0 %v318
  %362 = vmatprep.subr.mxu0 0.0
  %363 = vmatpush1.msra.mxu0 %v317
  %364 = vmatprep.subr.mxu0 0.0
  %365 = vmatpush1.msra.mxu0 %v316
  %366 = vmatprep.subr.mxu0 0.0
  %367 = vmatpush2.msra.mxu0 0.0
  %368 = vmatprep.subr.mxu0 0.0
  %369 = vmatpush2.msra.mxu0 0.0
  %370 = vmatprep.subr.mxu0 0.0
  %371 = vmatpush2.msra.mxu0 0.0
  %372 = vmatprep.subr.mxu0 0.0
  %373 = vmatpush2.msra.mxu0 0.0
  %374 = vmatprep.subr.mxu0 0.0
  %375 = vmatpush2.msra.mxu0 0.0
  %376 = vmatprep.subr.mxu0 0.0
  %377 = vmatpush2.msra.mxu0 0.0
  %378 = vmatprep.subr.mxu0 0.0
  %379 = vmatpush2.msra.mxu0 0.0
  %380 = vmatprep.subr.mxu0 0.0
  %381 = vmatpush2.msra.mxu0 0.0
  %382 = vmatprep.subr.mxu0 0.0
  %383 = vmatpush2.msra.mxu0 0.0
  %384 = vmatprep.subr.mxu0 0.0
  %385 = vmatpush2.msra.mxu0 0.0
  %386 = vmatprep.subr.mxu0 0.0
  %387 = vmatpush2.msra.mxu0 0.0
  %388 = vmatprep.subr.mxu0 0.0
  %389 = vmatpush2.msra.mxu0 0.0
  %390 = vmatprep.subr.mxu0 0.0
  %391 = vmatpush2.msra.mxu0 0.0
  %392 = vmatprep.subr.mxu0 0.0
  %393 = vmatpush2.msra.mxu0 0.0
  %394 = vmatprep.subr.mxu0 0.0
  %395 = vmatpush2.msra.mxu0 0.0
  %396 = vmatprep.subr.mxu0 0.0
  %397 = vmatpush2.msra.mxu0 0.0
  %398 = vmatprep.mubr.f32.mxu0 0.0
  %399 = vmatmul.mubr.f32.gmra.mxu0 %v53
  %v400 = vpop.f32.mrf.mxu0
  %v401 = vadd.f32 %v329, %v400
  %v402 = vpop.f32.mrf.mxu0
  %403 = vmatprep.mubr.f32.mxu0 0.0
  %404 = vmatmul.mubr.f32.gmra.mxu0 %v56
  %v405 = vpop.f32.mrf.mxu0
  %v406 = vadd.f32 %v329, %v405
  %v407 = vpop.f32.mrf.mxu0
  %408 = vmatprep.mubr.f32.mxu0 0.0
  %409 = vmatmul.mubr.f32.gmra.mxu0 %v59
  %v410 = vpop.f32.mrf.mxu0
  %v411 = vadd.f32 %v329, %v410
  %v412 = vpop.f32.mrf.mxu0
  %413 = vmatprep.mubr.f32.mxu0 0.0
  %414 = vmatmul.mubr.f32.gmra.mxu0 %v62
  %v415 = vpop.f32.mrf.mxu0
  %v416 = vadd.f32 %v329, %v415
  %v417 = vpop.f32.mrf.mxu0
  %418 = vmatprep.mubr.f32.mxu0 0.0
  %419 = vmatmul.mubr.f32.gmra.mxu0 %v65
  %v420 = vpop.f32.mrf.mxu0
  %v421 = vadd.f32 %v329, %v420
  %v422 = vpop.f32.mrf.mxu0
  %423 = vmatprep.mubr.f32.mxu0 0.0
  %424 = vmatmul.mubr.f32.gmra.mxu0 %v68
  %v425 = vpop.f32.mrf.mxu0
  %v426 = vadd.f32 %v329, %v425
  %v427 = vpop.f32.mrf.mxu0
  %428 = vmatprep.mubr.f32.mxu0 0.0
  %429 = vmatmul.mubr.f32.gmra.mxu0 %v71
  %v430 = vpop.f32.mrf.mxu0
  %v431 = vadd.f32 %v329, %v430
  %v432 = vpop.f32.mrf.mxu0
  %433 = vdwg.mxu0
  %s434 = scalar_lea.vmem %s3, 56
  %v435 = vld [vmem:[%s434] sm:$0xff]
  %v436 = vld [vmem:[%s434 + $0x8] sm:$0xff]
  %v437 = vld [vmem:[%s434 + $0x10] sm:$0xff]
  %v438 = vld [vmem:[%s434 + $0x18] sm:$0xff]
  %v439 = vld [vmem:[%s434 + $0x20] sm:$0xff]
  %v440 = vld [vmem:[%s434 + $0x28] sm:$0xff]
  %v441 = vld [vmem:[%s434 + $0x30] sm:$0x3]
  %s442 = scalar_lea.vmem %s5, 1
  %v443 = vld [vmem:[%s442] sm:$0x1]
  %v445 = vlaneseq
  %v446 = vshrl.u32 %v445, 7
  %v447 = vsub.s32 0, %v446
  %v448 = vrot.slane %v443, %v447
  %v451 = vsel %vm73, %v441, 0
  %453 = vmatprep.subr.mxu0 0.0
  %454 = vmatpush1.msra.mxu0 0.0
  %455 = vmatprep.subr.mxu0 0.0
  %456 = vmatpush1.msra.mxu0 0.0
  %457 = vmatprep.subr.mxu0 0.0
  %458 = vmatpush1.msra.mxu0 0.0
  %459 = vmatprep.subr.mxu0 0.0
  %460 = vmatpush1.msra.mxu0 0.0
  %461 = vmatprep.subr.mxu0 0.0
  %462 = vmatpush1.msra.mxu0 0.0
  %463 = vmatprep.subr.mxu0 0.0
  %464 = vmatpush1.msra.mxu0 0.0
  %465 = vmatprep.subr.mxu0 0.0
  %466 = vmatpush1.msra.mxu0 0.0
  %467 = vmatprep.subr.mxu0 0.0
  %468 = vmatpush1.msra.mxu0 0.0
  %469 = vmatprep.subr.mxu0 0.0
  %470 = vmatpush1.msra.mxu0 0.0
  %471 = vmatprep.subr.mxu0 0.0
  %472 = vmatpush1.msra.mxu0 %v451
  %473 = vmatprep.subr.mxu0 0.0
  %474 = vmatpush1.msra.mxu0 %v440
  %475 = vmatprep.subr.mxu0 0.0
  %476 = vmatpush1.msra.mxu0 %v439
  %477 = vmatprep.subr.mxu0 0.0
  %478 = vmatpush1.msra.mxu0 %v438
  %479 = vmatprep.subr.mxu0 0.0
  %480 = vmatpush1.msra.mxu0 %v437
  %481 = vmatprep.subr.mxu0 0.0
  %482 = vmatpush1.msra.mxu0 %v436
  %483 = vmatprep.subr.mxu0 0.0
  %484 = vmatpush1.msra.mxu0 %v435
  %485 = vmatprep.subr.mxu0 0.0
  %486 = vmatpush2.msra.mxu0 0.0
  %487 = vmatprep.subr.mxu0 0.0
  %488 = vmatpush2.msra.mxu0 0.0
  %489 = vmatprep.subr.mxu0 0.0
  %490 = vmatpush2.msra.mxu0 0.0
  %491 = vmatprep.subr.mxu0 0.0
  %492 = vmatpush2.msra.mxu0 0.0
  %493 = vmatprep.subr.mxu0 0.0
  %494 = vmatpush2.msra.mxu0 0.0
  %495 = vmatprep.subr.mxu0 0.0
  %496 = vmatpush2.msra.mxu0 0.0
  %497 = vmatprep.subr.mxu0 0.0
  %498 = vmatpush2.msra.mxu0 0.0
  %499 = vmatprep.subr.mxu0 0.0
  %500 = vmatpush2.msra.mxu0 0.0
  %501 = vmatprep.subr.mxu0 0.0
  %502 = vmatpush2.msra.mxu0 0.0
  %503 = vmatprep.subr.mxu0 0.0
  %504 = vmatpush2.msra.mxu0 0.0
  %505 = vmatprep.subr.mxu0 0.0
  %506 = vmatpush2.msra.mxu0 0.0
  %507 = vmatprep.subr.mxu0 0.0
  %508 = vmatpush2.msra.mxu0 0.0
  %509 = vmatprep.subr.mxu0 0.0
  %510 = vmatpush2.msra.mxu0 0.0
  %511 = vmatprep.subr.mxu0 0.0
  %512 = vmatpush2.msra.mxu0 0.0
  %513 = vmatprep.subr.mxu0 0.0
  %514 = vmatpush2.msra.mxu0 0.0
  %515 = vmatprep.subr.mxu0 0.0
  %516 = vmatpush2.msra.mxu0 0.0
  %517 = vmatprep.mubr.f32.mxu0 0.0
  %518 = vmatmul.mubr.f32.gmra.mxu0 %v192
  %v519 = vpop.f32.mrf.mxu0
  %v520 = vadd.f32 %v448, %v519
  %v521 = vpop.f32.mrf.mxu0
  %522 = vmatprep.mubr.f32.mxu0 0.0
  %523 = vmatmul.mubr.f32.gmra.mxu0 %v195
  %v524 = vpop.f32.mrf.mxu0
  %v525 = vadd.f32 %v448, %v524
  %v526 = vpop.f32.mrf.mxu0
  %527 = vmatprep.mubr.f32.mxu0 0.0
  %528 = vmatmul.mubr.f32.gmra.mxu0 %v198
  %v529 = vpop.f32.mrf.mxu0
  %v530 = vadd.f32 %v448, %v529
  %v531 = vpop.f32.mrf.mxu0
  %532 = vmatprep.mubr.f32.mxu0 0.0
  %533 = vmatmul.mubr.f32.gmra.mxu0 %v201
  %v534 = vpop.f32.mrf.mxu0
  %v535 = vadd.f32 %v448, %v534
  %v536 = vpop.f32.mrf.mxu0
  %537 = vmatprep.mubr.f32.mxu0 0.0
  %538 = vmatmul.mubr.f32.gmra.mxu0 %v204
  %v539 = vpop.f32.mrf.mxu0
  %v540 = vadd.f32 %v448, %v539
  %v541 = vpop.f32.mrf.mxu0
  %542 = vmatprep.mubr.f32.mxu0 0.0
  %543 = vmatmul.mubr.f32.gmra.mxu0 %v207
  %v544 = vpop.f32.mrf.mxu0
  %v545 = vadd.f32 %v448, %v544
  %v546 = vpop.f32.mrf.mxu0
  %547 = vmatprep.mubr.f32.mxu0 0.0
  %548 = vmatmul.mubr.f32.gmra.mxu0 %v210
  %v549 = vpop.f32.mrf.mxu0
  %v550 = vadd.f32 %v448, %v549
  %v551 = vpop.f32.mrf.mxu0
  %552 = vdwg.mxu0
  %s553 = scalar_lea.vmem %s2, 112
  %v554 = vld [vmem:[%s553] sm:$0xff]
  %v555 = vld [vmem:[%s553 + $0x8] sm:$0xff]
  %v556 = vld [vmem:[%s553 + $0x10] sm:$0xff]
  %v557 = vld [vmem:[%s553 + $0x18] sm:$0xff]
  %v558 = vld [vmem:[%s553 + $0x20] sm:$0xff]
  %v559 = vld [vmem:[%s553 + $0x28] sm:$0xff]
  %v560 = vld [vmem:[%s553 + $0x30] sm:$0x3]
  %s561 = scalar_lea.vmem %s4, 2
  %v562 = vld [vmem:[%s561] sm:$0x1]
  %v564 = vlaneseq
  %v565 = vshrl.u32 %v564, 7
  %v566 = vsub.s32 0, %v565
  %v567 = vrot.slane %v562, %v566
  %v570 = vsel %vm73, %v560, 0
  %572 = vmatprep.subr.mxu0 0.0
  %573 = vmatpush1.msra.mxu0 0.0
  %574 = vmatprep.subr.mxu0 0.0
  %575 = vmatpush1.msra.mxu0 0.0
  %576 = vmatprep.subr.mxu0 0.0
  %577 = vmatpush1.msra.mxu0 0.0
  %578 = vmatprep.subr.mxu0 0.0
  %579 = vmatpush1.msra.mxu0 0.0
  %580 = vmatprep.subr.mxu0 0.0
  %581 = vmatpush1.msra.mxu0 0.0
  %582 = vmatprep.subr.mxu0 0.0
  %583 = vmatpush1.msra.mxu0 0.0
  %584 = vmatprep.subr.mxu0 0.0
  %585 = vmatpush1.msra.mxu0 0.0
  %586 = vmatprep.subr.mxu0 0.0
  %587 = vmatpush1.msra.mxu0 0.0
  %588 = vmatprep.subr.mxu0 0.0
  %589 = vmatpush1.msra.mxu0 0.0
  %590 = vmatprep.subr.mxu0 0.0
  %591 = vmatpush1.msra.mxu0 %v570
  %592 = vmatprep.subr.mxu0 0.0
  %593 = vmatpush1.msra.mxu0 %v559
  %594 = vmatprep.subr.mxu0 0.0
  %595 = vmatpush1.msra.mxu0 %v558
  %596 = vmatprep.subr.mxu0 0.0
  %597 = vmatpush1.msra.mxu0 %v557
  %598 = vmatprep.subr.mxu0 0.0
  %599 = vmatpush1.msra.mxu0 %v556
  %600 = vmatprep.subr.mxu0 0.0
  %601 = vmatpush1.msra.mxu0 %v555
  %602 = vmatprep.subr.mxu0 0.0
  %603 = vmatpush1.msra.mxu0 %v554
  %604 = vmatprep.subr.mxu0 0.0
  %605 = vmatpush2.msra.mxu0 0.0
  %606 = vmatprep.subr.mxu0 0.0
  %607 = vmatpush2.msra.mxu0 0.0
  %608 = vmatprep.subr.mxu0 0.0
  %609 = vmatpush2.msra.mxu0 0.0
  %610 = vmatprep.subr.mxu0 0.0
  %611 = vmatpush2.msra.mxu0 0.0
  %612 = vmatprep.subr.mxu0 0.0
  %613 = vmatpush2.msra.mxu0 0.0
  %614 = vmatprep.subr.mxu0 0.0
  %615 = vmatpush2.msra.mxu0 0.0
  %616 = vmatprep.subr.mxu0 0.0
  %617 = vmatpush2.msra.mxu0 0.0
  %618 = vmatprep.subr.mxu0 0.0
  %619 = vmatpush2.msra.mxu0 0.0
  %620 = vmatprep.subr.mxu0 0.0
  %621 = vmatpush2.msra.mxu0 0.0
  %622 = vmatprep.subr.mxu0 0.0
  %623 = vmatpush2.msra.mxu0 0.0
  %624 = vmatprep.subr.mxu0 0.0
  %625 = vmatpush2.msra.mxu0 0.0
  %626 = vmatprep.subr.mxu0 0.0
  %627 = vmatpush2.msra.mxu0 0.0
  %628 = vmatprep.subr.mxu0 0.0
  %629 = vmatpush2.msra.mxu0 0.0
  %630 = vmatprep.subr.mxu0 0.0
  %631 = vmatpush2.msra.mxu0 0.0
  %632 = vmatprep.subr.mxu0 0.0
  %633 = vmatpush2.msra.mxu0 0.0
  %634 = vmatprep.subr.mxu0 0.0
  %635 = vmatpush2.msra.mxu0 0.0
  %636 = vmatprep.mubr.f32.mxu0 0.0
  %637 = vmatmul.mubr.f32.gmra.mxu0 %v53
  %v638 = vpop.f32.mrf.mxu0
  %v639 = vadd.f32 %v567, %v638
  %v640 = vpop.f32.mrf.mxu0
  %641 = vmatprep.mubr.f32.mxu0 0.0
  %642 = vmatmul.mubr.f32.gmra.mxu0 %v56
  %v643 = vpop.f32.mrf.mxu0
  %v644 = vadd.f32 %v567, %v643
  %v645 = vpop.f32.mrf.mxu0
  %646 = vmatprep.mubr.f32.mxu0 0.0
  %647 = vmatmul.mubr.f32.gmra.mxu0 %v59
  %v648 = vpop.f32.mrf.mxu0
  %v649 = vadd.f32 %v567, %v648
  %v650 = vpop.f32.mrf.mxu0
  %651 = vmatprep.mubr.f32.mxu0 0.0
  %652 = vmatmul.mubr.f32.gmra.mxu0 %v62
  %v653 = vpop.f32.mrf.mxu0
  %v654 = vadd.f32 %v567, %v653
  %v655 = vpop.f32.mrf.mxu0
  %656 = vmatprep.mubr.f32.mxu0 0.0
  %657 = vmatmul.mubr.f32.gmra.mxu0 %v65
  %v658 = vpop.f32.mrf.mxu0
  %v659 = vadd.f32 %v567, %v658
  %v660 = vpop.f32.mrf.mxu0
  %661 = vmatprep.mubr.f32.mxu0 0.0
  %662 = vmatmul.mubr.f32.gmra.mxu0 %v68
  %v663 = vpop.f32.mrf.mxu0
  %v664 = vadd.f32 %v567, %v663
  %v665 = vpop.f32.mrf.mxu0
  %666 = vmatprep.mubr.f32.mxu0 0.0
  %667 = vmatmul.mubr.f32.gmra.mxu0 %v71
  %v668 = vpop.f32.mrf.mxu0
  %v669 = vadd.f32 %v567, %v668
  %v670 = vpop.f32.mrf.mxu0
  %671 = vdwg.mxu0
  %s672 = scalar_lea.vmem %s3, 112
  %v673 = vld [vmem:[%s672] sm:$0xff]
  %v674 = vld [vmem:[%s672 + $0x8] sm:$0xff]
  %v675 = vld [vmem:[%s672 + $0x10] sm:$0xff]
  %v676 = vld [vmem:[%s672 + $0x18] sm:$0xff]
  %v677 = vld [vmem:[%s672 + $0x20] sm:$0xff]
  %v678 = vld [vmem:[%s672 + $0x28] sm:$0xff]
  %v679 = vld [vmem:[%s672 + $0x30] sm:$0x3]
  %s680 = scalar_lea.vmem %s5, 2
  %v681 = vld [vmem:[%s680] sm:$0x1]
  %v683 = vlaneseq
  %v684 = vshrl.u32 %v683, 7
  %v685 = vsub.s32 0, %v684
  %v686 = vrot.slane %v681, %v685
  %v689 = vsel %vm73, %v679, 0
  %691 = vmatprep.subr.mxu0 0.0
  %692 = vmatpush1.msra.mxu0 0.0
  %693 = vmatprep.subr.mxu0 0.0
  %694 = vmatpush1.msra.mxu0 0.0
  %695 = vmatprep.subr.mxu0 0.0
  %696 = vmatpush1.msra.mxu0 0.0
  %697 = vmatprep.subr.mxu0 0.0
  %698 = vmatpush1.msra.mxu0 0.0
  %699 = vmatprep.subr.mxu0 0.0
  %700 = vmatpush1.msra.mxu0 0.0
  %701 = vmatprep.subr.mxu0 0.0
  %702 = vmatpush1.msra.mxu0 0.0
  %703 = vmatprep.subr.mxu0 0.0
  %704 = vmatpush1.msra.mxu0 0.0
  %705 = vmatprep.subr.mxu0 0.0
  %706 = vmatpush1.msra.mxu0 0.0
  %707 = vmatprep.subr.mxu0 0.0
  %708 = vmatpush1.msra.mxu0 0.0
  %709 = vmatprep.subr.mxu0 0.0
  %710 = vmatpush1.msra.mxu0 %v689
  %711 = vmatprep.subr.mxu0 0.0
  %712 = vmatpush1.msra.mxu0 %v678
  %713 = vmatprep.subr.mxu0 0.0
  %714 = vmatpush1.msra.mxu0 %v677
  %715 = vmatprep.subr.mxu0 0.0
  %716 = vmatpush1.msra.mxu0 %v676
  %717 = vmatprep.subr.mxu0 0.0
  %718 = vmatpush1.msra.mxu0 %v675
  %719 = vmatprep.subr.mxu0 0.0
  %720 = vmatpush1.msra.mxu0 %v674
  %721 = vmatprep.subr.mxu0 0.0
  %722 = vmatpush1.msra.mxu0 %v673
  %723 = vmatprep.subr.mxu0 0.0
  %724 = vmatpush2.msra.mxu0 0.0
  %725 = vmatprep.subr.mxu0 0.0
  %726 = vmatpush2.msra.mxu0 0.0
  %727 = vmatprep.subr.mxu0 0.0
  %728 = vmatpush2.msra.mxu0 0.0
  %729 = vmatprep.subr.mxu0 0.0
  %730 = vmatpush2.msra.mxu0 0.0
  %731 = vmatprep.subr.mxu0 0.0
  %732 = vmatpush2.msra.mxu0 0.0
  %733 = vmatprep.subr.mxu0 0.0
  %734 = vmatpush2.msra.mxu0 0.0
  %735 = vmatprep.subr.mxu0 0.0
  %736 = vmatpush2.msra.mxu0 0.0
  %737 = vmatprep.subr.mxu0 0.0
  %738 = vmatpush2.msra.mxu0 0.0
  %739 = vmatprep.subr.mxu0 0.0
  %740 = vmatpush2.msra.mxu0 0.0
  %741 = vmatprep.subr.mxu0 0.0
  %742 = vmatpush2.msra.mxu0 0.0
  %743 = vmatprep.subr.mxu0 0.0
  %744 = vmatpush2.msra.mxu0 0.0
  %745 = vmatprep.subr.mxu0 0.0
  %746 = vmatpush2.msra.mxu0 0.0
  %747 = vmatprep.subr.mxu0 0.0
  %748 = vmatpush2.msra.mxu0 0.0
  %749 = vmatprep.subr.mxu0 0.0
  %750 = vmatpush2.msra.mxu0 0.0
  %751 = vmatprep.subr.mxu0 0.0
  %752 = vmatpush2.msra.mxu0 0.0
  %753 = vmatprep.subr.mxu0 0.0
  %754 = vmatpush2.msra.mxu0 0.0
  %755 = vmatprep.mubr.f32.mxu0 0.0
  %756 = vmatmul.mubr.f32.gmra.mxu0 %v192
  %v757 = vpop.f32.mrf.mxu0
  %v758 = vadd.f32 %v686, %v757
  %v759 = vpop.f32.mrf.mxu0
  %760 = vmatprep.mubr.f32.mxu0 0.0
  %761 = vmatmul.mubr.f32.gmra.mxu0 %v195
  %v762 = vpop.f32.mrf.mxu0
  %v763 = vadd.f32 %v686, %v762
  %v764 = vpop.f32.mrf.mxu0
  %765 = vmatprep.mubr.f32.mxu0 0.0
  %766 = vmatmul.mubr.f32.gmra.mxu0 %v198
  %v767 = vpop.f32.mrf.mxu0
  %v768 = vadd.f32 %v686, %v767
  %v769 = vpop.f32.mrf.mxu0
  %770 = vmatprep.mubr.f32.mxu0 0.0
  %771 = vmatmul.mubr.f32.gmra.mxu0 %v201
  %v772 = vpop.f32.mrf.mxu0
  %v773 = vadd.f32 %v686, %v772
  %v774 = vpop.f32.mrf.mxu0
  %775 = vmatprep.mubr.f32.mxu0 0.0
  %776 = vmatmul.mubr.f32.gmra.mxu0 %v204
  %v777 = vpop.f32.mrf.mxu0
  %v778 = vadd.f32 %v686, %v777
  %v779 = vpop.f32.mrf.mxu0
  %780 = vmatprep.mubr.f32.mxu0 0.0
  %781 = vmatmul.mubr.f32.gmra.mxu0 %v207
  %v782 = vpop.f32.mrf.mxu0
  %v783 = vadd.f32 %v686, %v782
  %v784 = vpop.f32.mrf.mxu0
  %785 = vmatprep.mubr.f32.mxu0 0.0
  %786 = vmatmul.mubr.f32.gmra.mxu0 %v210
  %v787 = vpop.f32.mrf.mxu0
  %v788 = vadd.f32 %v686, %v787
  %v789 = vpop.f32.mrf.mxu0
  %790 = vdwg.mxu0
  %v791 = vadd.f32 %v144, %v282
  %v792 = vadd.f32 %v149, %v287
  %v793 = vadd.f32 %v154, %v292
  %v794 = vadd.f32 %v159, %v297
  %v795 = vadd.f32 %v164, %v302
  %v796 = vadd.f32 %v169, %v307
  %v797 = vadd.f32 %v174, %v312
  %v798 = vxor.u32 %v791, 2147483648
  %v799 = vxor.u32 %v792, 2147483648
  %v800 = vxor.u32 %v793, 2147483648
  %v801 = vxor.u32 %v794, 2147483648
  %v802 = vxor.u32 %v795, 2147483648
  %v803 = vxor.u32 %v796, 2147483648
  %v804 = vxor.u32 %v797, 2147483648
  %v805 = vmul.f32 %v798, 1.442695
  %v806 = vpow.pop %v805
  %v807 = vmul.f32 %v799, 1.442695
  %v808 = vpow.pop %v807
  %v809 = vmul.f32 %v800, 1.442695
  %v810 = vpow.pop %v809
  %v811 = vmul.f32 %v801, 1.442695
  %v812 = vpow.pop %v811
  %v813 = vmul.f32 %v802, 1.442695
  %v814 = vpow.pop %v813
  %v815 = vmul.f32 %v803, 1.442695
  %v816 = vpow.pop %v815
  %v817 = vmul.f32 %v804, 1.442695
  %v818 = vpow.pop %v817
  %v819 = vadd.f32 %v806, 1.0
  %v820 = vadd.f32 %v808, 1.0
  %v821 = vadd.f32 %v810, 1.0
  %v822 = vadd.f32 %v812, 1.0
  %v823 = vadd.f32 %v814, 1.0
  %v824 = vadd.f32 %v816, 1.0
  %v825 = vadd.f32 %v818, 1.0
  %v826 = vrcp.pop %v819
  %v827 = vmul.f32 1.0, %v826
  %v828 = vrcp.pop %v820
  %v829 = vmul.f32 1.0, %v828
  %v830 = vrcp.pop %v821
  %v831 = vmul.f32 1.0, %v830
  %v832 = vrcp.pop %v822
  %v833 = vmul.f32 1.0, %v832
  %v834 = vrcp.pop %v823
  %v835 = vmul.f32 1.0, %v834
  %v836 = vrcp.pop %v824
  %v837 = vmul.f32 1.0, %v836
  %v838 = vrcp.pop %v825
  %v839 = vmul.f32 1.0, %v838
  %v840 = vadd.f32 %v401, %v520
  %v841 = vadd.f32 %v406, %v525
  %v842 = vadd.f32 %v411, %v530
  %v843 = vadd.f32 %v416, %v535
  %v844 = vadd.f32 %v421, %v540
  %v845 = vadd.f32 %v426, %v545
  %v846 = vadd.f32 %v431, %v550
  %v847 = vxor.u32 %v840, 2147483648
  %v848 = vxor.u32 %v841, 2147483648
  %v849 = vxor.u32 %v842, 2147483648
  %v850 = vxor.u32 %v843, 2147483648
  %v851 = vxor.u32 %v844, 2147483648
  %v852 = vxor.u32 %v845, 2147483648
  %v853 = vxor.u32 %v846, 2147483648
  %v854 = vmul.f32 %v847, 1.442695
  %v855 = vpow.pop %v854
  %v856 = vmul.f32 %v848, 1.442695
  %v857 = vpow.pop %v856
  %v858 = vmul.f32 %v849, 1.442695
  %v859 = vpow.pop %v858
  %v860 = vmul.f32 %v850, 1.442695
  %v861 = vpow.pop %v860
  %v862 = vmul.f32 %v851, 1.442695
  %v863 = vpow.pop %v862
  %v864 = vmul.f32 %v852, 1.442695
  %v865 = vpow.pop %v864
  %v866 = vmul.f32 %v853, 1.442695
  %v867 = vpow.pop %v866
  %v868 = vadd.f32 %v855, 1.0
  %v869 = vadd.f32 %v857, 1.0
  %v870 = vadd.f32 %v859, 1.0
  %v871 = vadd.f32 %v861, 1.0
  %v872 = vadd.f32 %v863, 1.0
  %v873 = vadd.f32 %v865, 1.0
  %v874 = vadd.f32 %v867, 1.0
  %v875 = vrcp.pop %v868
  %v876 = vmul.f32 1.0, %v875
  %v877 = vrcp.pop %v869
  %v878 = vmul.f32 1.0, %v877
  %v879 = vrcp.pop %v870
  %v880 = vmul.f32 1.0, %v879
  %v881 = vrcp.pop %v871
  %v882 = vmul.f32 1.0, %v881
  %v883 = vrcp.pop %v872
  %v884 = vmul.f32 1.0, %v883
  %v885 = vrcp.pop %v873
  %v886 = vmul.f32 1.0, %v885
  %v887 = vrcp.pop %v874
  %v888 = vmul.f32 1.0, %v887
  %v889 = vmul.f32 %v827, %v758
  %v890 = vmul.f32 %v829, %v763
  %v891 = vmul.f32 %v831, %v768
  %v892 = vmul.f32 %v833, %v773
  %v893 = vmul.f32 %v835, %v778
  %v894 = vmul.f32 %v837, %v783
  %v895 = vmul.f32 %v839, %v788
  %v896 = vadd.f32 %v639, %v889
  %v897 = vadd.f32 %v644, %v890
  %v898 = vadd.f32 %v649, %v891
  %v899 = vadd.f32 %v654, %v892
  %v900 = vadd.f32 %v659, %v893
  %v901 = vadd.f32 %v664, %v894
  %v902 = vadd.f32 %v669, %v895
  %v903 = vtanh.pop %v896
  %v904 = vtanh.pop %v897
  %v905 = vtanh.pop %v898
  %v906 = vtanh.pop %v899
  %v907 = vtanh.pop %v900
  %v908 = vtanh.pop %v901
  %v909 = vtanh.pop %v902
  %v910 = vsub.f32 1.0, %v876
  %v911 = vsub.f32 1.0, %v878
  %v912 = vsub.f32 1.0, %v880
  %v913 = vsub.f32 1.0, %v882
  %v914 = vsub.f32 1.0, %v884
  %v915 = vsub.f32 1.0, %v886
  %v916 = vsub.f32 1.0, %v888
  %v917 = vmul.f32 %v910, %v903
  %v918 = vmul.f32 %v911, %v904
  %v919 = vmul.f32 %v912, %v905
  %v920 = vmul.f32 %v913, %v906
  %v921 = vmul.f32 %v914, %v907
  %v922 = vmul.f32 %v915, %v908
  %v923 = vmul.f32 %v916, %v909
  %v924 = vmul.f32 %v876, %v30
  %v925 = vmul.f32 %v878, %v31
  %v926 = vmul.f32 %v880, %v32
  %v927 = vmul.f32 %v882, %v33
  %v928 = vmul.f32 %v884, %v34
  %v929 = vmul.f32 %v886, %v35
  %v930 = vmul.f32 %v888, %v36
  %v931 = vadd.f32 %v917, %v924
  %v932 = vadd.f32 %v918, %v925
  %v933 = vadd.f32 %v919, %v926
  %v934 = vadd.f32 %v920, %v927
  %v935 = vadd.f32 %v921, %v928
  %v936 = vadd.f32 %v922, %v929
  %v937 = vadd.f32 %v923, %v930
  %938 = vst.msk [vmem:[%s6] sm:$0xff] %vm51, %v931
  %939 = vst.msk [vmem:[%s6 + $0x8] sm:$0xff] %vm51, %v932
  %940 = vst.msk [vmem:[%s6 + $0x10] sm:$0xff] %vm51, %v933
  %941 = vst.msk [vmem:[%s6 + $0x18] sm:$0xff] %vm51, %v934
  %942 = vst.msk [vmem:[%s6 + $0x20] sm:$0xff] %vm51, %v935
  %943 = vst.msk [vmem:[%s6 + $0x28] sm:$0xff] %vm51, %v936
  %vm944 = vcmask 402432
  %945 = vst.msk [vmem:[%s6 + $0x30] sm:$0x3] %vm944, %v937
  // Predicated region
  $region26: #{gnn_component_forward.4} parent=0 // pred_check
    _
  $region27: #{gnn_component_forward.4} parent=0 // pred_check_branch
    %947 = sbr.rel (0) target = $region29
  $region28: #{gnn_component_forward.4} parent=0 // pred_region
    _
  $region29: #{gnn_component_forward.4} parent=0 // pred_fallthru
    _
  // Predicated region
  $region30: #{gnn_component_forward.4} parent=0 // pred_check
    _
  $region31: #{gnn_component_forward.4} parent=0 // pred_check_branch
    %949 = sbr.rel (0) target = $region33
  $region32: #{gnn_component_forward.4} parent=0 // pred_region
    _
  $region33: #{gnn_component_forward.4} parent=0 // pred_fallthru
    _

// kernel: gnn_component_forward.5
$region0: #{gnn_component_forward.5}
  #allocation0 [shape = 'u32[]', space=smem, size = 0x4, offset = 0x4, fixed_abs, tag = 'smem constant byte address 0x4 - core index']
  #allocation1 [shape = 'u32[144,128]{1,0:T(1,128)}', space=vmem, size = 0x12000, scoped, tag = 'internal scratch']
  #allocation2 [shape = 'f32[256,50]{1,0:T(8,128)}', space=vmem, size = 0x20000, scoped, tag = 'scratch operand']
  %s0 = inlined_call_operand.vmem [shape: f32[256,256], index: 0, kind: input, shape index: {}]
  %s1 = inlined_call_operand.vmem [shape: f32[256,50], index: 1, kind: input, shape index: {}]
  %s2 = inlined_call_operand.vmem [shape: f32[50,50], index: 2, kind: input, shape index: {}]
  %s3 = inlined_call_operand.vmem [shape: f32[256,50], index: 3, kind: output, shape index: {}]
  %s4 = sld [smem:[#allocation0]]
  $region49: #{gnn_component_forward.5} parent=0
    _
  %s6 = ssub.s32 1, %s4
  %s7 = scalar_select 0, %s6, %s4
  loop: start=0, step=1, limit=4
  $region2: #{gnn_component_forward.5} parent=0 // loop_pre_header
    _
  $region3: #{gnn_component_forward.5} parent=0 // loop_header
    %s9 = sphi 0, %s13
    %p10 = scmp.ge.s32.totalorder %s9, 4
    %s19 = sphi 0, %s21
    %s22 = sphi 0, %s19
    %s23 = sphi 0, %s22
    %s39 = sphi 0, %s23
    %s43 = sphi 0, %s43
    %s45 = sphi 0, %s43
    %s46 = sphi 0, %s45
    %s60 = sphi 0, %s46
    %s64 = sphi 0, %s64
    %s66 = sphi 0, %s64
    %s67 = sphi 0, %s66
    %s81 = sphi 0, %s67
    %s87 = sphi 0, %s89
    %s90 = sphi 0, %s87
    %s91 = sphi 0, %s90
    %s107 = sphi 0, %s91
  $region4: #{gnn_component_forward.5} parent=0 // loop_header_branch
    %12 = sbr.rel (%p10) target = $region8
  $region5: #{gnn_component_forward.5} parent=0 // loop_body
    %s14 = ssub.s32 %s9, 1
    %s15 = ssub.s32 %s9, 2
    %s16 = sadd.s32 %s9, 1
    %s17 = ssub.s32 %s9, %s16
    %p18 = scmp.eq.s32.totalorder %s17, 0
    %s20 = sadd.s32 %s19, 1
    %s21 = scalar_select %p18, %s19, %s20
    %p24 = pneg %p18
    %p25 = scmp.eq.s32.totalorder %s9, 1
    %p26 = por %p24, %p25
    %p27 = scmp.ne.s32.totalorder %s19, %s22
    %p28 = scmp.eq.s32.totalorder %s9, 0
    %p29 = por %p27, %p28
    %p30 = scmp.ne.s32.totalorder %s19, %s22
    %p31 = scmp.eq.s32.totalorder %s14, 1
    %p32 = por %p30, %p31
    %p33 = scmp.ne.s32.totalorder %s22, %s23
    %p34 = scmp.eq.s32.totalorder %s14, 0
    %p35 = por %p33, %p34
    %p36 = scmp.ne.s32.totalorder %s22, %s23
    %p37 = scmp.eq.s32.totalorder %s15, 1
    %p38 = por %p36, %p37
    %p40 = scmp.ne.s32.totalorder %s23, %s39
    %p41 = scmp.eq.s32.totalorder %s15, 0
    %p42 = por %p40, %p41
    %s44 = sadd.s32 %s43, 1
    %p47 = scmp.eq.s32.totalorder %s9, 1
    %p48 = scmp.ne.s32.totalorder %s43, %s45
    %p49 = scmp.eq.s32.totalorder %s9, 0
    %p50 = por %p48, %p49
    %p51 = scmp.ne.s32.totalorder %s43, %s45
    %p52 = scmp.eq.s32.totalorder %s14, 1
    %p53 = por %p51, %p52
    %p54 = scmp.ne.s32.totalorder %s45, %s46
    %p55 = scmp.eq.s32.totalorder %s14, 0
    %p56 = por %p54, %p55
    %p57 = scmp.ne.s32.totalorder %s45, %s46
    %p58 = scmp.eq.s32.totalorder %s15, 1
    %p59 = por %p57, %p58
    %p61 = scmp.ne.s32.totalorder %s46, %s60
    %p62 = scmp.eq.s32.totalorder %s15, 0
    %p63 = por %p61, %p62
    %s65 = sadd.s32 %s64, 1
    %p68 = scmp.eq.s32.totalorder %s9, 1
    %p69 = scmp.ne.s32.totalorder %s64, %s66
    %p70 = scmp.eq.s32.totalorder %s9, 0
    %p71 = por %p69, %p70
    %p72 = scmp.ne.s32.totalorder %s64, %s66
    %p73 = scmp.eq.s32.totalorder %s14, 1
    %p74 = por %p72, %p73
    %p75 = scmp.ne.s32.totalorder %s66, %s67
    %p76 = scmp.eq.s32.totalorder %s14, 0
    %p77 = por %p75, %p76
    %p78 = scmp.ne.s32.totalorder %s66, %s67
    %p79 = scmp.eq.s32.totalorder %s15, 1
    %p80 = por %p78, %p79
    %p82 = scmp.ne.s32.totalorder %s67, %s81
    %p83 = scmp.eq.s32.totalorder %s15, 0
    %p84 = por %p82, %p83
    %s85 = ssub.s32 %s9, %s16
    %p86 = scmp.eq.s32.totalorder %s85, 0
    %s88 = sadd.s32 %s87, 1
    %s89 = scalar_select %p86, %s87, %s88
    %p92 = pneg %p86
    %p93 = scmp.eq.s32.totalorder %s9, 1
    %p94 = por %p92, %p93
    %p95 = scmp.ne.s32.totalorder %s87, %s90
    %p96 = scmp.eq.s32.totalorder %s9, 0
    %p97 = por %p95, %p96
    %p98 = scmp.ne.s32.totalorder %s87, %s90
    %p99 = scmp.eq.s32.totalorder %s14, 1
    %p100 = por %p98, %p99
    %p101 = scmp.ne.s32.totalorder %s90, %s91
    %p102 = scmp.eq.s32.totalorder %s14, 0
    %p103 = por %p101, %p102
    %p104 = scmp.ne.s32.totalorder %s90, %s91
    %p105 = scmp.eq.s32.totalorder %s15, 1
    %p106 = por %p104, %p105
    %p108 = scmp.ne.s32.totalorder %s91, %s107
    %p109 = scmp.eq.s32.totalorder %s15, 0
    %p110 = por %p108, %p109
    %p111 = scmp.le.s32.totalorder 1, %s9
    %p112 = scmp.lt.s32.totalorder %s9, 3
    %p113 = pnand %p111, %p112
    %p114 = pneg %p113
    // Predicated region
    $region9: #{gnn_component_forward.5} parent=5 // pred_check
      _
    $region10: #{gnn_component_forward.5} parent=5 // pred_check_branch
      %116 = sbr.rel (%p113) target = $region12
    $region11: #{gnn_component_forward.5} parent=5 // pred_region
      %s117 = ssub.s32 %s9, 1
      // Predicated region
      $region13: #{gnn_component_forward.5} parent=11 // pred_check
        %p118 = pneg %p56
      $region14: #{gnn_component_forward.5} parent=11 // pred_check_branch
        %120 = sbr.rel (%p118) target = $region16
      $region15: #{gnn_component_forward.5} parent=11 // pred_region
        _
      $region16: #{gnn_component_forward.5} parent=11 // pred_fallthru
        _
      // Predicated region
      $region17: #{gnn_component_forward.5} parent=11 // pred_check
        %p121 = pneg %p77
      $region18: #{gnn_component_forward.5} parent=11 // pred_check_branch
        %123 = sbr.rel (%p121) target = $region20
      $region19: #{gnn_component_forward.5} parent=11 // pred_region
        _
      $region20: #{gnn_component_forward.5} parent=11 // pred_fallthru
        _
    $region12: #{gnn_component_forward.5} parent=5 // pred_fallthru
      _
    %p124 = scmp.lt.s32.totalorder %s9, 2
    // Predicated region
    $region21: #{gnn_component_forward.5} parent=5 // pred_check
      %p125 = pneg %p124
    $region22: #{gnn_component_forward.5} parent=5 // pred_check_branch
      %127 = sbr.rel (%p125) target = $region24
    $region23: #{gnn_component_forward.5} parent=5 // pred_region
      // Predicated region
      $region25: #{gnn_component_forward.5} parent=23 // pred_check
        %p128 = pneg %p29
      $region26: #{gnn_component_forward.5} parent=23 // pred_check_branch
        %130 = sbr.rel (%p128) target = $region28
      $region27: #{gnn_component_forward.5} parent=23 // pred_region
        %s131 = smul.u32 16, %s9
        %p132 = scmp.lt.s32.totalorder %s131, 31
        %s133 = scalar_select %p132, %s131, 31
        %s134 = smul.addr %s133, 2
        %s135 = smul.addr %s134, 8
        %s136 = scalar_lea.vmem %s0, %s135
        %s137 = smul.u32 16, %s9
      $region28: #{gnn_component_forward.5} parent=23 // pred_fallthru
        _
    $region24: #{gnn_component_forward.5} parent=5 // pred_fallthru
      _
    %p138 = scmp.le.s32.totalorder 1, %s9
    %p139 = scmp.lt.s32.totalorder %s9, 3
    %p140 = pnand %p138, %p139
    %p141 = pneg %p140
    // Predicated region
    $region29: #{gnn_component_forward.5} parent=5 // pred_check
      _
    $region30: #{gnn_component_forward.5} parent=5 // pred_check_branch
      %143 = sbr.rel (%p140) target = $region32
    $region31: #{gnn_component_forward.5} parent=5 // pred_region
      %s144 = ssub.s32 %s9, 1
      %s145 = smul.u32 16, %s14
      %p146 = scmp.lt.s32.totalorder %s145, 31
      %s147 = scalar_select %p146, %s145, 31
      %s148 = smul.addr %s147, 2
      %s149 = smul.addr %s148, 8
      %s150 = scalar_lea.vmem %s0, %s149
      %p151 = pneg %p35
      %p152 = pneg %p32
      %p153 = pneg %p56
      %p154 = pneg %p53
      %p155 = pneg %p77
      %p156 = pneg %p74
      %p157 = pneg %p103
      %p158 = pneg %p100
      %s159 = smul.u32 16, %s14
      %p160 = scmp.lt.s32.totalorder %s159, 31
      %s161 = scalar_select %p160, %s159, 31
      %s162 = smul.addr %s161, 8
      %s163 = scalar_lea.vmem %s3, %s162
      %s164 = smul.u32 16, %s14
      %p165 = scmp.lt.s32.totalorder %s164, 31
      %s166 = scalar_select %p165, %s164, 31
      %s167 = smul.addr %s166, 2
      %s168 = smul.addr %s167, 8
      %s169 = scalar_lea.vmem %s0, %s168
      %s170 = smul.u32 16, %s14
      %s171 = smul.u32 16, %s14
      %p172 = scmp.lt.s32.totalorder %s171, 31
      %s173 = scalar_select %p172, %s171, 31
      %s174 = smul.addr %s173, 8
      %s175 = scalar_lea.vmem %s3, %s174
      %s176 = smul.u32 16, %s14
      %p177 = scmp.eq.s32.totalorder %s14, 0
      // Predicated region
      $region33: #{gnn_component_forward.5} parent=31 // pred_check
        %p178 = pneg %p177
      $region34: #{gnn_component_forward.5} parent=31 // pred_check_branch
        %180 = sbr.rel (%p178) target = $region36
      $region35: #{gnn_component_forward.5} parent=31 // pred_region
        %v181 = vld [vmem:[%s1] sm:$0xff]
        %v182 = vld [vmem:[%s1 + $0x8] sm:$0xff]
        %v183 = vld [vmem:[%s1 + $0x10] sm:$0xff]
        %v184 = vld [vmem:[%s1 + $0x18] sm:$0xff]
        %v185 = vld [vmem:[%s1 + $0x20] sm:$0xff]
        %v186 = vld [vmem:[%s1 + $0x28] sm:$0xff]
        %v187 = vld [vmem:[%s1 + $0x30] sm:$0xff]
        %v188 = vld [vmem:[%s1 + $0x38] sm:$0xff]
        %v189 = vld [vmem:[%s1 + $0x40] sm:$0xff]
        %v190 = vld [vmem:[%s1 + $0x48] sm:$0xff]
        %v191 = vld [vmem:[%s1 + $0x50] sm:$0xff]
        %v192 = vld [vmem:[%s1 + $0x58] sm:$0xff]
        %v193 = vld [vmem:[%s1 + $0x60] sm:$0xff]
        %v194 = vld [vmem:[%s1 + $0x68] sm:$0xff]
        %v195 = vld [vmem:[%s1 + $0x70] sm:$0xff]
        %v196 = vld [vmem:[%s1 + $0x78] sm:$0xff]
        %v197 = vld [vmem:[%s1 + $0x80] sm:$0xff]
        %v198 = vld [vmem:[%s1 + $0x88] sm:$0xff]
        %v199 = vld [vmem:[%s1 + $0x90] sm:$0xff]
        %v200 = vld [vmem:[%s1 + $0x98] sm:$0xff]
        %v201 = vld [vmem:[%s1 + $0xa0] sm:$0xff]
        %v202 = vld [vmem:[%s1 + $0xa8] sm:$0xff]
        %v203 = vld [vmem:[%s1 + $0xb0] sm:$0xff]
        %v204 = vld [vmem:[%s1 + $0xb8] sm:$0xff]
        %v205 = vld [vmem:[%s1 + $0xc0] sm:$0xff]
        %v206 = vld [vmem:[%s1 + $0xc8] sm:$0xff]
        %v207 = vld [vmem:[%s1 + $0xd0] sm:$0xff]
        %v208 = vld [vmem:[%s1 + $0xd8] sm:$0xff]
        %v209 = vld [vmem:[%s1 + $0xe0] sm:$0xff]
        %v210 = vld [vmem:[%s1 + $0xe8] sm:$0xff]
        %v211 = vld [vmem:[%s1 + $0xf0] sm:$0xff]
        %v212 = vld [vmem:[%s1 + $0xf8] sm:$0xff]
        %v213 = vld [vmem:[%s2] sm:$0xff]
        %v214 = vld [vmem:[%s2 + $0x8] sm:$0xff]
        %v215 = vld [vmem:[%s2 + $0x10] sm:$0xff]
        %v216 = vld [vmem:[%s2 + $0x18] sm:$0xff]
        %v217 = vld [vmem:[%s2 + $0x20] sm:$0xff]
        %v218 = vld [vmem:[%s2 + $0x28] sm:$0xff]
        %v219 = vld [vmem:[%s2 + $0x30] sm:$0x3]
        %vm220 = vcmask 408576
        %v222 = vsel %vm220, %v181, 0
        %v225 = vsel %vm220, %v182, 0
        %v228 = vsel %vm220, %v183, 0
        %v231 = vsel %vm220, %v184, 0
        %v234 = vsel %vm220, %v185, 0
        %v237 = vsel %vm220, %v186, 0
        %v240 = vsel %vm220, %v187, 0
        %v243 = vsel %vm220, %v188, 0
        %v246 = vsel %vm220, %v189, 0
        %v249 = vsel %vm220, %v190, 0
        %v252 = vsel %vm220, %v191, 0
        %v255 = vsel %vm220, %v192, 0
        %v258 = vsel %vm220, %v193, 0
        %v261 = vsel %vm220, %v194, 0
        %v264 = vsel %vm220, %v195, 0
        %v267 = vsel %vm220, %v196, 0
        %v270 = vsel %vm220, %v197, 0
        %v273 = vsel %vm220, %v198, 0
        %v276 = vsel %vm220, %v199, 0
        %v279 = vsel %vm220, %v200, 0
        %v282 = vsel %vm220, %v201, 0
        %v285 = vsel %vm220, %v202, 0
        %v288 = vsel %vm220, %v203, 0
        %v291 = vsel %vm220, %v204, 0
        %v294 = vsel %vm220, %v205, 0
        %v297 = vsel %vm220, %v206, 0
        %v300 = vsel %vm220, %v207, 0
        %v303 = vsel %vm220, %v208, 0
        %v306 = vsel %vm220, %v209, 0
        %v309 = vsel %vm220, %v210, 0
        %v312 = vsel %vm220, %v211, 0
        %v315 = vsel %vm220, %v212, 0
        %vm317 = vcmask 1041408
        %v319 = vsel %vm317, %v219, 0
        %321 = vmatprep.subr.mxu0 0.0
        %322 = vmatpush1.msra.mxu0 0.0
        %323 = vmatprep.subr.mxu0 0.0
        %324 = vmatpush1.msra.mxu0 0.0
        %325 = vmatprep.subr.mxu0 0.0
        %326 = vmatpush1.msra.mxu0 0.0
        %327 = vmatprep.subr.mxu0 0.0
        %328 = vmatpush1.msra.mxu0 0.0
        %329 = vmatprep.subr.mxu0 0.0
        %330 = vmatpush1.msra.mxu0 0.0
        %331 = vmatprep.subr.mxu0 0.0
        %332 = vmatpush1.msra.mxu0 0.0
        %333 = vmatprep.subr.mxu0 0.0
        %334 = vmatpush1.msra.mxu0 0.0
        %335 = vmatprep.subr.mxu0 0.0
        %336 = vmatpush1.msra.mxu0 0.0
        %337 = vmatprep.subr.mxu0 0.0
        %338 = vmatpush1.msra.mxu0 0.0
        %339 = vmatprep.subr.mxu0 0.0
        %340 = vmatpush1.msra.mxu0 %v319
        %341 = vmatprep.subr.mxu0 0.0
        %342 = vmatpush1.msra.mxu0 %v218
        %343 = vmatprep.subr.mxu0 0.0
        %344 = vmatpush1.msra.mxu0 %v217
        %345 = vmatprep.subr.mxu0 0.0
        %346 = vmatpush1.msra.mxu0 %v216
        %347 = vmatprep.subr.mxu0 0.0
        %348 = vmatpush1.msra.mxu0 %v215
        %349 = vmatprep.subr.mxu0 0.0
        %350 = vmatpush1.msra.mxu0 %v214
        %351 = vmatprep.subr.mxu0 0.0
        %352 = vmatpush1.msra.mxu0 %v213
        %353 = vmatprep.subr.mxu0 0.0
        %354 = vmatpush2.msra.mxu0 0.0
        %355 = vmatprep.subr.mxu0 0.0
        %356 = vmatpush2.msra.mxu0 0.0
        %357 = vmatprep.subr.mxu0 0.0
        %358 = vmatpush2.msra.mxu0 0.0
        %359 = vmatprep.subr.mxu0 0.0
        %360 = vmatpush2.msra.mxu0 0.0
        %361 = vmatprep.subr.mxu0 0.0
        %362 = vmatpush2.msra.mxu0 0.0
        %363 = vmatprep.subr.mxu0 0.0
        %364 = vmatpush2.msra.mxu0 0.0
        %365 = vmatprep.subr.mxu0 0.0
        %366 = vmatpush2.msra.mxu0 0.0
        %367 = vmatprep.subr.mxu0 0.0
        %368 = vmatpush2.msra.mxu0 0.0
        %369 = vmatprep.subr.mxu0 0.0
        %370 = vmatpush2.msra.mxu0 0.0
        %371 = vmatprep.subr.mxu0 0.0
        %372 = vmatpush2.msra.mxu0 0.0
        %373 = vmatprep.subr.mxu0 0.0
        %374 = vmatpush2.msra.mxu0 0.0
        %375 = vmatprep.subr.mxu0 0.0
        %376 = vmatpush2.msra.mxu0 0.0
        %377 = vmatprep.subr.mxu0 0.0
        %378 = vmatpush2.msra.mxu0 0.0
        %379 = vmatprep.subr.mxu0 0.0
        %380 = vmatpush2.msra.mxu0 0.0
        %381 = vmatprep.subr.mxu0 0.0
        %382 = vmatpush2.msra.mxu0 0.0
        %383 = vmatprep.subr.mxu0 0.0
        %384 = vmatpush2.msra.mxu0 0.0
        %385 = vmatprep.mubr.f32.mxu0 0.0
        %386 = vmatmul.mubr.f32.gmra.mxu0 %v222
        %v387 = vpop.f32.mrf.mxu0
        %v388 = vadd.f32 0.0, %v387
        %v389 = vpop.f32.mrf.mxu0
        %390 = vmatprep.mubr.f32.mxu0 0.0
        %391 = vmatmul.mubr.f32.gmra.mxu0 %v225
        %v392 = vpop.f32.mrf.mxu0
        %v393 = vadd.f32 0.0, %v392
        %v394 = vpop.f32.mrf.mxu0
        %395 = vmatprep.mubr.f32.mxu0 0.0
        %396 = vmatmul.mubr.f32.gmra.mxu0 %v228
        %v397 = vpop.f32.mrf.mxu0
        %v398 = vadd.f32 0.0, %v397
        %v399 = vpop.f32.mrf.mxu0
        %400 = vmatprep.mubr.f32.mxu0 0.0
        %401 = vmatmul.mubr.f32.gmra.mxu0 %v231
        %v402 = vpop.f32.mrf.mxu0
        %v403 = vadd.f32 0.0, %v402
        %v404 = vpop.f32.mrf.mxu0
        %405 = vmatprep.mubr.f32.mxu0 0.0
        %406 = vmatmul.mubr.f32.gmra.mxu0 %v234
        %v407 = vpop.f32.mrf.mxu0
        %v408 = vadd.f32 0.0, %v407
        %v409 = vpop.f32.mrf.mxu0
        %410 = vmatprep.mubr.f32.mxu0 0.0
        %411 = vmatmul.mubr.f32.gmra.mxu0 %v237
        %v412 = vpop.f32.mrf.mxu0
        %v413 = vadd.f32 0.0, %v412
        %v414 = vpop.f32.mrf.mxu0
        %415 = vmatprep.mubr.f32.mxu0 0.0
        %416 = vmatmul.mubr.f32.gmra.mxu0 %v240
        %v417 = vpop.f32.mrf.mxu0
        %v418 = vadd.f32 0.0, %v417
        %v419 = vpop.f32.mrf.mxu0
        %420 = vmatprep.mubr.f32.mxu0 0.0
        %421 = vmatmul.mubr.f32.gmra.mxu0 %v243
        %v422 = vpop.f32.mrf.mxu0
        %v423 = vadd.f32 0.0, %v422
        %v424 = vpop.f32.mrf.mxu0
        %425 = vmatprep.mubr.f32.mxu0 0.0
        %426 = vmatmul.mubr.f32.gmra.mxu0 %v246
        %v427 = vpop.f32.mrf.mxu0
        %v428 = vadd.f32 0.0, %v427
        %v429 = vpop.f32.mrf.mxu0
        %430 = vmatprep.mubr.f32.mxu0 0.0
        %431 = vmatmul.mubr.f32.gmra.mxu0 %v249
        %v432 = vpop.f32.mrf.mxu0
        %v433 = vadd.f32 0.0, %v432
        %v434 = vpop.f32.mrf.mxu0
        %435 = vmatprep.mubr.f32.mxu0 0.0
        %436 = vmatmul.mubr.f32.gmra.mxu0 %v252
        %v437 = vpop.f32.mrf.mxu0
        %v438 = vadd.f32 0.0, %v437
        %v439 = vpop.f32.mrf.mxu0
        %440 = vmatprep.mubr.f32.mxu0 0.0
        %441 = vmatmul.mubr.f32.gmra.mxu0 %v255
        %v442 = vpop.f32.mrf.mxu0
        %v443 = vadd.f32 0.0, %v442
        %v444 = vpop.f32.mrf.mxu0
        %445 = vmatprep.mubr.f32.mxu0 0.0
        %446 = vmatmul.mubr.f32.gmra.mxu0 %v258
        %v447 = vpop.f32.mrf.mxu0
        %v448 = vadd.f32 0.0, %v447
        %v449 = vpop.f32.mrf.mxu0
        %450 = vmatprep.mubr.f32.mxu0 0.0
        %451 = vmatmul.mubr.f32.gmra.mxu0 %v261
        %v452 = vpop.f32.mrf.mxu0
        %v453 = vadd.f32 0.0, %v452
        %v454 = vpop.f32.mrf.mxu0
        %455 = vmatprep.mubr.f32.mxu0 0.0
        %456 = vmatmul.mubr.f32.gmra.mxu0 %v264
        %v457 = vpop.f32.mrf.mxu0
        %v458 = vadd.f32 0.0, %v457
        %v459 = vpop.f32.mrf.mxu0
        %460 = vmatprep.mubr.f32.mxu0 0.0
        %461 = vmatmul.mubr.f32.gmra.mxu0 %v267
        %v462 = vpop.f32.mrf.mxu0
        %v463 = vadd.f32 0.0, %v462
        %v464 = vpop.f32.mrf.mxu0
        %465 = vmatprep.mubr.f32.mxu0 0.0
        %466 = vmatmul.mubr.f32.gmra.mxu0 %v270
        %v467 = vpop.f32.mrf.mxu0
        %v468 = vadd.f32 0.0, %v467
        %v469 = vpop.f32.mrf.mxu0
        %470 = vmatprep.mubr.f32.mxu0 0.0
        %471 = vmatmul.mubr.f32.gmra.mxu0 %v273
        %v472 = vpop.f32.mrf.mxu0
        %v473 = vadd.f32 0.0, %v472
        %v474 = vpop.f32.mrf.mxu0
        %475 = vmatprep.mubr.f32.mxu0 0.0
        %476 = vmatmul.mubr.f32.gmra.mxu0 %v276
        %v477 = vpop.f32.mrf.mxu0
        %v478 = vadd.f32 0.0, %v477
        %v479 = vpop.f32.mrf.mxu0
        %480 = vmatprep.mubr.f32.mxu0 0.0
        %481 = vmatmul.mubr.f32.gmra.mxu0 %v279
        %v482 = vpop.f32.mrf.mxu0
        %v483 = vadd.f32 0.0, %v482
        %v484 = vpop.f32.mrf.mxu0
        %485 = vmatprep.mubr.f32.mxu0 0.0
        %486 = vmatmul.mubr.f32.gmra.mxu0 %v282
        %v487 = vpop.f32.mrf.mxu0
        %v488 = vadd.f32 0.0, %v487
        %v489 = vpop.f32.mrf.mxu0
        %490 = vmatprep.mubr.f32.mxu0 0.0
        %491 = vmatmul.mubr.f32.gmra.mxu0 %v285
        %v492 = vpop.f32.mrf.mxu0
        %v493 = vadd.f32 0.0, %v492
        %v494 = vpop.f32.mrf.mxu0
        %495 = vmatprep.mubr.f32.mxu0 0.0
        %496 = vmatmul.mubr.f32.gmra.mxu0 %v288
        %v497 = vpop.f32.mrf.mxu0
        %v498 = vadd.f32 0.0, %v497
        %v499 = vpop.f32.mrf.mxu0
        %500 = vmatprep.mubr.f32.mxu0 0.0
        %501 = vmatmul.mubr.f32.gmra.mxu0 %v291
        %v502 = vpop.f32.mrf.mxu0
        %v503 = vadd.f32 0.0, %v502
        %v504 = vpop.f32.mrf.mxu0
        %505 = vmatprep.mubr.f32.mxu0 0.0
        %506 = vmatmul.mubr.f32.gmra.mxu0 %v294
        %v507 = vpop.f32.mrf.mxu0
        %v508 = vadd.f32 0.0, %v507
        %v509 = vpop.f32.mrf.mxu0
        %510 = vmatprep.mubr.f32.mxu0 0.0
        %511 = vmatmul.mubr.f32.gmra.mxu0 %v297
        %v512 = vpop.f32.mrf.mxu0
        %v513 = vadd.f32 0.0, %v512
        %v514 = vpop.f32.mrf.mxu0
        %515 = vmatprep.mubr.f32.mxu0 0.0
        %516 = vmatmul.mubr.f32.gmra.mxu0 %v300
        %v517 = vpop.f32.mrf.mxu0
        %v518 = vadd.f32 0.0, %v517
        %v519 = vpop.f32.mrf.mxu0
        %520 = vmatprep.mubr.f32.mxu0 0.0
        %521 = vmatmul.mubr.f32.gmra.mxu0 %v303
        %v522 = vpop.f32.mrf.mxu0
        %v523 = vadd.f32 0.0, %v522
        %v524 = vpop.f32.mrf.mxu0
        %525 = vmatprep.mubr.f32.mxu0 0.0
        %526 = vmatmul.mubr.f32.gmra.mxu0 %v306
        %v527 = vpop.f32.mrf.mxu0
        %v528 = vadd.f32 0.0, %v527
        %v529 = vpop.f32.mrf.mxu0
        %530 = vmatprep.mubr.f32.mxu0 0.0
        %531 = vmatmul.mubr.f32.gmra.mxu0 %v309
        %v532 = vpop.f32.mrf.mxu0
        %v533 = vadd.f32 0.0, %v532
        %v534 = vpop.f32.mrf.mxu0
        %535 = vmatprep.mubr.f32.mxu0 0.0
        %536 = vmatmul.mubr.f32.gmra.mxu0 %v312
        %v537 = vpop.f32.mrf.mxu0
        %v538 = vadd.f32 0.0, %v537
        %v539 = vpop.f32.mrf.mxu0
        %540 = vmatprep.mubr.f32.mxu0 0.0
        %541 = vmatmul.mubr.f32.gmra.mxu0 %v315
        %v542 = vpop.f32.mrf.mxu0
        %v543 = vadd.f32 0.0, %v542
        %v544 = vpop.f32.mrf.mxu0
        %545 = vdwg.mxu0
        %546 = vst.msk [vmem:[#allocation2] sm:$0xff] %vm220, %v388
        %547 = vst.msk [vmem:[#allocation2 + $0x8] sm:$0xff] %vm220, %v393
        %548 = vst.msk [vmem:[#allocation2 + $0x10] sm:$0xff] %vm220, %v398
        %549 = vst.msk [vmem:[#allocation2 + $0x18] sm:$0xff] %vm220, %v403
        %550 = vst.msk [vmem:[#allocation2 + $0x20] sm:$0xff] %vm220, %v408
        %551 = vst.msk [vmem:[#allocation2 + $0x28] sm:$0xff] %vm220, %v413
        %552 = vst.msk [vmem:[#allocation2 + $0x30] sm:$0xff] %vm220, %v418
        %553 = vst.msk [vmem:[#allocation2 + $0x38] sm:$0xff] %vm220, %v423
        %554 = vst.msk [vmem:[#allocation2 + $0x40] sm:$0xff] %vm220, %v428
        %555 = vst.msk [vmem:[#allocation2 + $0x48] sm:$0xff] %vm220, %v433
        %556 = vst.msk [vmem:[#allocation2 + $0x50] sm:$0xff] %vm220, %v438
        %557 = vst.msk [vmem:[#allocation2 + $0x58] sm:$0xff] %vm220, %v443
        %558 = vst.msk [vmem:[#allocation2 + $0x60] sm:$0xff] %vm220, %v448
        %559 = vst.msk [vmem:[#allocation2 + $0x68] sm:$0xff] %vm220, %v453
        %560 = vst.msk [vmem:[#allocation2 + $0x70] sm:$0xff] %vm220, %v458
        %561 = vst.msk [vmem:[#allocation2 + $0x78] sm:$0xff] %vm220, %v463
        %562 = vst.msk [vmem:[#allocation2 + $0x80] sm:$0xff] %vm220, %v468
        %563 = vst.msk [vmem:[#allocation2 + $0x88] sm:$0xff] %vm220, %v473
        %564 = vst.msk [vmem:[#allocation2 + $0x90] sm:$0xff] %vm220, %v478
        %565 = vst.msk [vmem:[#allocation2 + $0x98] sm:$0xff] %vm220, %v483
        %566 = vst.msk [vmem:[#allocation2 + $0xa0] sm:$0xff] %vm220, %v488
        %567 = vst.msk [vmem:[#allocation2 + $0xa8] sm:$0xff] %vm220, %v493
        %568 = vst.msk [vmem:[#allocation2 + $0xb0] sm:$0xff] %vm220, %v498
        %569 = vst.msk [vmem:[#allocation2 + $0xb8] sm:$0xff] %vm220, %v503
        %570 = vst.msk [vmem:[#allocation2 + $0xc0] sm:$0xff] %vm220, %v508
        %571 = vst.msk [vmem:[#allocation2 + $0xc8] sm:$0xff] %vm220, %v513
        %572 = vst.msk [vmem:[#allocation2 + $0xd0] sm:$0xff] %vm220, %v518
        %573 = vst.msk [vmem:[#allocation2 + $0xd8] sm:$0xff] %vm220, %v523
        %574 = vst.msk [vmem:[#allocation2 + $0xe0] sm:$0xff] %vm220, %v528
        %575 = vst.msk [vmem:[#allocation2 + $0xe8] sm:$0xff] %vm220, %v533
        %576 = vst.msk [vmem:[#allocation2 + $0xf0] sm:$0xff] %vm220, %v538
        %577 = vst.msk [vmem:[#allocation2 + $0xf8] sm:$0xff] %vm220, %v543
      $region36: #{gnn_component_forward.5} parent=31 // pred_fallthru
        _
      %v578 = vld [vmem:[%s169] sm:$0xff]
      %v579 = vld [vmem:[%s169 + $0x8] sm:$0xff]
      %v580 = vld [vmem:[%s169 + $0x10] sm:$0xff]
      %v581 = vld [vmem:[%s169 + $0x18] sm:$0xff]
      %v582 = vld [vmem:[%s169 + $0x20] sm:$0xff]
      %v583 = vld [vmem:[%s169 + $0x28] sm:$0xff]
      %v584 = vld [vmem:[%s169 + $0x30] sm:$0xff]
      %v585 = vld [vmem:[%s169 + $0x38] sm:$0xff]
      %v586 = vld [vmem:[%s169 + $0x40] sm:$0xff]
      %v587 = vld [vmem:[%s169 + $0x48] sm:$0xff]
      %v588 = vld [vmem:[%s169 + $0x50] sm:$0xff]
      %v589 = vld [vmem:[%s169 + $0x58] sm:$0xff]
      %v590 = vld [vmem:[%s169 + $0x60] sm:$0xff]
      %v591 = vld [vmem:[%s169 + $0x68] sm:$0xff]
      %v592 = vld [vmem:[%s169 + $0x70] sm:$0xff]
      %v593 = vld [vmem:[%s169 + $0x78] sm:$0xff]
      %v594 = vld [vmem:[%s169 + $0x80] sm:$0xff]
      %v595 = vld [vmem:[%s169 + $0x88] sm:$0xff]
      %v596 = vld [vmem:[%s169 + $0x90] sm:$0xff]
      %v597 = vld [vmem:[%s169 + $0x98] sm:$0xff]
      %v598 = vld [vmem:[%s169 + $0xa0] sm:$0xff]
      %v599 = vld [vmem:[%s169 + $0xa8] sm:$0xff]
      %v600 = vld [vmem:[%s169 + $0xb0] sm:$0xff]
      %v601 = vld [vmem:[%s169 + $0xb8] sm:$0xff]
      %v602 = vld [vmem:[%s169 + $0xc0] sm:$0xff]
      %v603 = vld [vmem:[%s169 + $0xc8] sm:$0xff]
      %v604 = vld [vmem:[%s169 + $0xd0] sm:$0xff]
      %v605 = vld [vmem:[%s169 + $0xd8] sm:$0xff]
      %v606 = vld [vmem:[%s169 + $0xe0] sm:$0xff]
      %v607 = vld [vmem:[%s169 + $0xe8] sm:$0xff]
      %v608 = vld [vmem:[%s169 + $0xf0] sm:$0xff]
      %v609 = vld [vmem:[%s169 + $0xf8] sm:$0xff]
      %v610 = vld [vmem:[#allocation2] sm:$0xff]
      %v611 = vld [vmem:[#allocation2 + $0x8] sm:$0xff]
      %v612 = vld [vmem:[#allocation2 + $0x10] sm:$0xff]
      %v613 = vld [vmem:[#allocation2 + $0x18] sm:$0xff]
      %v614 = vld [vmem:[#allocation2 + $0x20] sm:$0xff]
      %v615 = vld [vmem:[#allocation2 + $0x28] sm:$0xff]
      %v616 = vld [vmem:[#allocation2 + $0x30] sm:$0xff]
      %v617 = vld [vmem:[#allocation2 + $0x38] sm:$0xff]
      %v618 = vld [vmem:[#allocation2 + $0x40] sm:$0xff]
      %v619 = vld [vmem:[#allocation2 + $0x48] sm:$0xff]
      %v620 = vld [vmem:[#allocation2 + $0x50] sm:$0xff]
      %v621 = vld [vmem:[#allocation2 + $0x58] sm:$0xff]
      %v622 = vld [vmem:[#allocation2 + $0x60] sm:$0xff]
      %v623 = vld [vmem:[#allocation2 + $0x68] sm:$0xff]
      %v624 = vld [vmem:[#allocation2 + $0x70] sm:$0xff]
      %v625 = vld [vmem:[#allocation2 + $0x78] sm:$0xff]
      %v626 = vld [vmem:[#allocation2 + $0x80] sm:$0xff]
      %v627 = vld [vmem:[#allocation2 + $0x88] sm:$0xff]
      %v628 = vld [vmem:[#allocation2 + $0x90] sm:$0xff]
      %v629 = vld [vmem:[#allocation2 + $0x98] sm:$0xff]
      %v630 = vld [vmem:[#allocation2 + $0xa0] sm:$0xff]
      %v631 = vld [vmem:[#allocation2 + $0xa8] sm:$0xff]
      %v632 = vld [vmem:[#allocation2 + $0xb0] sm:$0xff]
      %v633 = vld [vmem:[#allocation2 + $0xb8] sm:$0xff]
      %v634 = vld [vmem:[#allocation2 + $0xc0] sm:$0xff]
      %v635 = vld [vmem:[#allocation2 + $0xc8] sm:$0xff]
      %v636 = vld [vmem:[#allocation2 + $0xd0] sm:$0xff]
      %v637 = vld [vmem:[#allocation2 + $0xd8] sm:$0xff]
      %v638 = vld [vmem:[#allocation2 + $0xe0] sm:$0xff]
      %v639 = vld [vmem:[#allocation2 + $0xe8] sm:$0xff]
      %v640 = vld [vmem:[#allocation2 + $0xf0] sm:$0xff]
      %v641 = vld [vmem:[#allocation2 + $0xf8] sm:$0xff]
      %642 = vmatprep.subr.mxu0 0.0
      %643 = vmatpush1.msra.mxu0 %v625
      %644 = vmatprep.subr.mxu0 0.0
      %645 = vmatpush1.msra.mxu0 %v624
      %646 = vmatprep.subr.mxu0 0.0
      %647 = vmatpush1.msra.mxu0 %v623
      %648 = vmatprep.subr.mxu0 0.0
      %649 = vmatpush1.msra.mxu0 %v622
      %650 = vmatprep.subr.mxu0 0.0
      %651 = vmatpush1.msra.mxu0 %v621
      %652 = vmatprep.subr.mxu0 0.0
      %653 = vmatpush1.msra.mxu0 %v620
      %654 = vmatprep.subr.mxu0 0.0
      %655 = vmatpush1.msra.mxu0 %v619
      %656 = vmatprep.subr.mxu0 0.0
      %657 = vmatpush1.msra.mxu0 %v618
      %658 = vmatprep.subr.mxu0 0.0
      %659 = vmatpush1.msra.mxu0 %v617
      %660 = vmatprep.subr.mxu0 0.0
      %661 = vmatpush1.msra.mxu0 %v616
      %662 = vmatprep.subr.mxu0 0.0
      %663 = vmatpush1.msra.mxu0 %v615
      %664 = vmatprep.subr.mxu0 0.0
      %665 = vmatpush1.msra.mxu0 %v614
      %666 = vmatprep.subr.mxu0 0.0
      %667 = vmatpush1.msra.mxu0 %v613
      %668 = vmatprep.subr.mxu0 0.0
      %669 = vmatpush1.msra.mxu0 %v612
      %670 = vmatprep.subr.mxu0 0.0
      %671 = vmatpush1.msra.mxu0 %v611
      %672 = vmatprep.subr.mxu0 0.0
      %673 = vmatpush1.msra.mxu0 %v610
      %674 = vmatprep.subr.mxu0 0.0
      %675 = vmatpush2.msra.mxu0 %v641
      %676 = vmatprep.subr.mxu0 0.0
      %677 = vmatpush2.msra.mxu0 %v640
      %678 = vmatprep.subr.mxu0 0.0
      %679 = vmatpush2.msra.mxu0 %v639
      %680 = vmatprep.subr.mxu0 0.0
      %681 = vmatpush2.msra.mxu0 %v638
      %682 = vmatprep.subr.mxu0 0.0
      %683 = vmatpush2.msra.mxu0 %v637
      %684 = vmatprep.subr.mxu0 0.0
      %685 = vmatpush2.msra.mxu0 %v636
      %686 = vmatprep.subr.mxu0 0.0
      %687 = vmatpush2.msra.mxu0 %v635
      %688 = vmatprep.subr.mxu0 0.0
      %689 = vmatpush2.msra.mxu0 %v634
      %690 = vmatprep.subr.mxu0 0.0
      %691 = vmatpush2.msra.mxu0 %v633
      %692 = vmatprep.subr.mxu0 0.0
      %693 = vmatpush2.msra.mxu0 %v632
      %694 = vmatprep.subr.mxu0 0.0
      %695 = vmatpush2.msra.mxu0 %v631
      %696 = vmatprep.subr.mxu0 0.0
      %697 = vmatpush2.msra.mxu0 %v630
      %698 = vmatprep.subr.mxu0 0.0
      %699 = vmatpush2.msra.mxu0 %v629
      %700 = vmatprep.subr.mxu0 0.0
      %701 = vmatpush2.msra.mxu0 %v628
      %702 = vmatprep.subr.mxu0 0.0
      %703 = vmatpush2.msra.mxu0 %v627
      %704 = vmatprep.subr.mxu0 0.0
      %705 = vmatpush2.msra.mxu0 %v626
      %706 = vmatprep.mubr.f32.mxu0 %v579
      %707 = vmatmul.mubr.f32.gmra.mxu0 %v578
      %v708 = vpop.f32.mrf.mxu0
      %v709 = vadd.f32 0.0, %v708
      %v710 = vpop.f32.mrf.mxu0
      %711 = vmatprep.mubr.f32.mxu0 %v581
      %712 = vmatmul.mubr.f32.gmra.mxu0 %v580
      %v713 = vpop.f32.mrf.mxu0
      %v714 = vadd.f32 0.0, %v713
      %v715 = vpop.f32.mrf.mxu0
      %716 = vmatprep.mubr.f32.mxu0 %v583
      %717 = vmatmul.mubr.f32.gmra.mxu0 %v582
      %v718 = vpop.f32.mrf.mxu0
      %v719 = vadd.f32 0.0, %v718
      %v720 = vpop.f32.mrf.mxu0
      %721 = vmatprep.mubr.f32.mxu0 %v585
      %722 = vmatmul.mubr.f32.gmra.mxu0 %v584
      %v723 = vpop.f32.mrf.mxu0
      %v724 = vadd.f32 0.0, %v723
      %v725 = vpop.f32.mrf.mxu0
      %726 = vmatprep.mubr.f32.mxu0 %v587
      %727 = vmatmul.mubr.f32.gmra.mxu0 %v586
      %v728 = vpop.f32.mrf.mxu0
      %v729 = vadd.f32 0.0, %v728
      %v730 = vpop.f32.mrf.mxu0
      %731 = vmatprep.mubr.f32.mxu0 %v589
      %732 = vmatmul.mubr.f32.gmra.mxu0 %v588
      %v733 = vpop.f32.mrf.mxu0
      %v734 = vadd.f32 0.0, %v733
      %v735 = vpop.f32.mrf.mxu0
      %736 = vmatprep.mubr.f32.mxu0 %v591
      %737 = vmatmul.mubr.f32.gmra.mxu0 %v590
      %v738 = vpop.f32.mrf.mxu0
      %v739 = vadd.f32 0.0, %v738
      %v740 = vpop.f32.mrf.mxu0
      %741 = vmatprep.mubr.f32.mxu0 %v593
      %742 = vmatmul.mubr.f32.gmra.mxu0 %v592
      %v743 = vpop.f32.mrf.mxu0
      %v744 = vadd.f32 0.0, %v743
      %v745 = vpop.f32.mrf.mxu0
      %746 = vmatprep.mubr.f32.mxu0 %v595
      %747 = vmatmul.mubr.f32.gmra.mxu0 %v594
      %v748 = vpop.f32.mrf.mxu0
      %v749 = vadd.f32 0.0, %v748
      %v750 = vpop.f32.mrf.mxu0
      %751 = vmatprep.mubr.f32.mxu0 %v597
      %752 = vmatmul.mubr.f32.gmra.mxu0 %v596
      %v753 = vpop.f32.mrf.mxu0
      %v754 = vadd.f32 0.0, %v753
      %v755 = vpop.f32.mrf.mxu0
      %756 = vmatprep.mubr.f32.mxu0 %v599
      %757 = vmatmul.mubr.f32.gmra.mxu0 %v598
      %v758 = vpop.f32.mrf.mxu0
      %v759 = vadd.f32 0.0, %v758
      %v760 = vpop.f32.mrf.mxu0
      %761 = vmatprep.mubr.f32.mxu0 %v601
      %762 = vmatmul.mubr.f32.gmra.mxu0 %v600
      %v763 = vpop.f32.mrf.mxu0
      %v764 = vadd.f32 0.0, %v763
      %v765 = vpop.f32.mrf.mxu0
      %766 = vmatprep.mubr.f32.mxu0 %v603
      %767 = vmatmul.mubr.f32.gmra.mxu0 %v602
      %v768 = vpop.f32.mrf.mxu0
      %v769 = vadd.f32 0.0, %v768
      %v770 = vpop.f32.mrf.mxu0
      %771 = vmatprep.mubr.f32.mxu0 %v605
      %772 = vmatmul.mubr.f32.gmra.mxu0 %v604
      %v773 = vpop.f32.mrf.mxu0
      %v774 = vadd.f32 0.0, %v773
      %v775 = vpop.f32.mrf.mxu0
      %776 = vmatprep.mubr.f32.mxu0 %v607
      %777 = vmatmul.mubr.f32.gmra.mxu0 %v606
      %v778 = vpop.f32.mrf.mxu0
      %v779 = vadd.f32 0.0, %v778
      %v780 = vpop.f32.mrf.mxu0
      %781 = vmatprep.mubr.f32.mxu0 %v609
      %782 = vmatmul.mubr.f32.gmra.mxu0 %v608
      %v783 = vpop.f32.mrf.mxu0
      %v784 = vadd.f32 0.0, %v783
      %v785 = vpop.f32.mrf.mxu0
      %786 = vdwg.mxu0
      %v787 = vtanh.pop %v709
      %v788 = vtanh.pop %v714
      %v789 = vtanh.pop %v719
      %v790 = vtanh.pop %v724
      %v791 = vtanh.pop %v729
      %v792 = vtanh.pop %v734
      %v793 = vtanh.pop %v739
      %v794 = vtanh.pop %v744
      %v795 = vtanh.pop %v749
      %v796 = vtanh.pop %v754
      %v797 = vtanh.pop %v759
      %v798 = vtanh.pop %v764
      %v799 = vtanh.pop %v769
      %v800 = vtanh.pop %v774
      %v801 = vtanh.pop %v779
      %v802 = vtanh.pop %v784
      %vm803 = vcmask 408576
      %804 = vst.msk [vmem:[%s175] sm:$0xff] %vm803, %v787
      %805 = vst.msk [vmem:[%s175 + $0x8] sm:$0xff] %vm803, %v788
      %806 = vst.msk [vmem:[%s175 + $0x10] sm:$0xff] %vm803, %v789
      %807 = vst.msk [vmem:[%s175 + $0x18] sm:$0xff] %vm803, %v790
      %808 = vst.msk [vmem:[%s175 + $0x20] sm:$0xff] %vm803, %v791
      %809 = vst.msk [vmem:[%s175 + $0x28] sm:$0xff] %vm803, %v792
      %810 = vst.msk [vmem:[%s175 + $0x30] sm:$0xff] %vm803, %v793
      %811 = vst.msk [vmem:[%s175 + $0x38] sm:$0xff] %vm803, %v794
      %812 = vst.msk [vmem:[%s175 + $0x40] sm:$0xff] %vm803, %v795
      %813 = vst.msk [vmem:[%s175 + $0x48] sm:$0xff] %vm803, %v796
      %814 = vst.msk [vmem:[%s175 + $0x50] sm:$0xff] %vm803, %v797
      %815 = vst.msk [vmem:[%s175 + $0x58] sm:$0xff] %vm803, %v798
      %816 = vst.msk [vmem:[%s175 + $0x60] sm:$0xff] %vm803, %v799
      %817 = vst.msk [vmem:[%s175 + $0x68] sm:$0xff] %vm803, %v800
      %818 = vst.msk [vmem:[%s175 + $0x70] sm:$0xff] %vm803, %v801
      %819 = vst.msk [vmem:[%s175 + $0x78] sm:$0xff] %vm803, %v802
      %s820 = smul.u32 16, %s14
      %p821 = scmp.lt.s32.totalorder %s820, 31
      %s822 = scalar_select %p821, %s820, 31
      %s823 = smul.addr %s822, 8
      %s824 = scalar_lea.vmem %s3, %s823
      // Predicated region
      $region37: #{gnn_component_forward.5} parent=31 // pred_check
        %p825 = pneg %p100
      $region38: #{gnn_component_forward.5} parent=31 // pred_check_branch
        %827 = sbr.rel (%p825) target = $region40
      $region39: #{gnn_component_forward.5} parent=31 // pred_region
        %s828 = smul.u32 16, %s14
      $region40: #{gnn_component_forward.5} parent=31 // pred_fallthru
        _
    $region32: #{gnn_component_forward.5} parent=5 // pred_fallthru
      _
    %p829 = scmp.le.s32.totalorder 2, %s9
    // Predicated region
    $region41: #{gnn_component_forward.5} parent=5 // pred_check
      %p830 = pneg %p829
    $region42: #{gnn_component_forward.5} parent=5 // pred_check_branch
      %832 = sbr.rel (%p830) target = $region44
    $region43: #{gnn_component_forward.5} parent=5 // pred_region
      %s833 = ssub.s32 %s9, 2
      // Predicated region
      $region45: #{gnn_component_forward.5} parent=43 // pred_check
        %p834 = pneg %p106
      $region46: #{gnn_component_forward.5} parent=43 // pred_check_branch
        %836 = sbr.rel (%p834) target = $region48
      $region47: #{gnn_component_forward.5} parent=43 // pred_region
        %s837 = smul.u32 16, %s15
        %p838 = scmp.lt.s32.totalorder %s837, 31
        %s839 = scalar_select %p838, %s837, 31
        %s840 = smul.addr %s839, 8
        %s841 = scalar_lea.vmem %s3, %s840
      $region48: #{gnn_component_forward.5} parent=43 // pred_fallthru
        _
    $region44: #{gnn_component_forward.5} parent=5 // pred_fallthru
      _
  $region6: #{gnn_component_forward.5} parent=0 // loop_footer
    %s13 = sadd.s32 1, %s9
  $region7: #{gnn_component_forward.5} parent=0 // loop_footer_branch
    %8 = sbr.rel target = $region3
  $region8: #{gnn_component_forward.5} parent=0 // loop_exit
    _

</llo_original>
